<compile_context>
chip_gen: v7x
topology: tpu7x:2x2x1
jax: 0.10.0
libtpu: 0.0.40
codegen_flags: <defaults>
</compile_context>

<pallas_src>
import functools

import jax
import jax.numpy as jnp
from jax import lax
from jax.experimental import pallas as pl
from jax.experimental.pallas import tpu as pltpu


# --------------------------------------------------------------------------
# Pallas kernel: masked multi-layer GRU cell (single time step) + LayerNorm
# --------------------------------------------------------------------------
def _gru_ln_kernel(x_ref, h_ref, m_ref, wih0_ref, *rest,
                   num_layers, H, Hp, eps):
    # Unpack refs (w_ihr only exists when num_layers > 1).
    if num_layers > 1:
        wihr_ref, *rest = rest
    else:
        wihr_ref = None
    whh_ref, bi_ref, bhn_ref, gamma_ref, beta_ref, out_ref, hout_ref = rest

    mask = m_ref[...]                      # (TN, 1) f32
    x = x_ref[...]                         # (TN, D) f32 -- input to layer 0

    for l in range(num_layers):            # static, small
        h_prev = h_ref[l] * mask           # (TN, Hp) f32; padded lanes stay 0
        w_ih = wih0_ref[...] if l == 0 else wihr_ref[l - 1]   # (K, 3Hp) bf16

        # bf16 MXU matmuls with f32 accumulation; r/z biases pre-folded in bi.
        gi = jnp.dot(x.astype(jnp.bfloat16), w_ih,
                     preferred_element_type=jnp.float32) + bi_ref[l]
        gh = jnp.dot(h_prev.astype(jnp.bfloat16), whh_ref[l],
                     preferred_element_type=jnp.float32)

        # 128-aligned gate slices -> zero-cost views, full-vreg elementwise.
        r = jax.nn.sigmoid(gi[:, 0:Hp] + gh[:, 0:Hp])
        z = jax.nn.sigmoid(gi[:, Hp:2 * Hp] + gh[:, Hp:2 * Hp])
        n = jnp.tanh(gi[:, 2 * Hp:] + r * (gh[:, 2 * Hp:] + bhn_ref[l]))
        h_new = n + z * (h_prev - n)        # == (1-z)*n + z*h; pad lanes -> 0

        hout_ref[l] = h_new                 # lane-dense (TN, Hp) store
        x = h_new                           # feed next layer

    # LayerNorm over the real hidden width H.  Padding lanes are exactly zero,
    # so lane sums over Hp equal sums over H; one-pass variance, all f32.
    s1 = jnp.sum(x, axis=-1, keepdims=True)
    s2 = jnp.sum(x * x, axis=-1, keepdims=True)
    mean = s1 * (1.0 / H)
    var = s2 * (1.0 / H) - mean * mean
    y = (x - mean) * lax.rsqrt(var + eps)
    out_ref[...] = y * gamma_ref[...] + beta_ref[...]   # gamma/beta pad = 0


# --------------------------------------------------------------------------
# Wrappers
# --------------------------------------------------------------------------
def _auto_batch_tile(n, max_tile=256):
    if n >= max_tile:
        return max_tile
    return max(8, ((n + 7) // 8) * 8)


def _vmem_limit_bytes(packed, TN, D):
    """Budget VMEM from the actual footprint instead of a fixed number."""
    L, Hp = packed["num_layers"], packed["padded_dim"]
    nbytes = lambda a: 0 if a is None else a.size * a.dtype.itemsize
    weights = sum(nbytes(packed.get(k)) for k in
                  ("w_ih0", "w_ihr", "w_hh", "b_i", "b_hn", "gamma", "beta"))
    tiles = (TN * D + L * TN * Hp + TN          # x, carry, mask
             + TN * Hp + L * TN * Hp) * 4       # out, hout
    temps = 8 * TN * 3 * Hp * 4                 # gi/gh/r/z/n/... intermediates
    need = 2 * weights + 2 * tiles + temps      # double-buffering headroom
    # TODO(synk): above ~56 MiB (production H on v7x, 64 MiB VMEM) stream the
    # per-layer weights from HBM with pltpu.make_async_copy instead.
    return int(min(max(2 * need, 8 << 20), 56 << 20))


def rnn_step(inputs, carry, masks, packed, batch_tile=None):
    """One masked GRU step + LayerNorm, carry in lane-dense (L, N, Hp) layout.

    inputs (N, D) f32, carry (L, N, Hp) f32 (zero pad lanes), masks (N, 1) f32.
    Returns (out (N, H), new_carry (L, N, Hp)).  No per-step layout ops.
    """
    N, D = inputs.shape
    L, H, Hp = packed["num_layers"], packed["hidden_dim"], packed["padded_dim"]
    TN = batch_tile or _auto_batch_tile(N)
    Np = ((N + TN - 1) // TN) * TN
    if Np != N:                             # pad rows are masked/zero -> inert
        inputs = jnp.pad(inputs, ((0, Np - N), (0, 0)))
        masks = jnp.pad(masks, ((0, Np - N), (0, 0)))
        carry = jnp.pad(carry, ((0, 0), (0, Np - N), (0, 0)))

    kernel = functools.partial(_gru_ln_kernel,
                               num_layers=L, H=H, Hp=Hp, eps=1e-5)

    args = [inputs, carry, masks, packed["w_ih0"]]
    in_specs = [
        pl.BlockSpec((TN, D), lambda i: (i, 0)),
        pl.BlockSpec((L, TN, Hp), lambda i: (0, i, 0)),
        pl.BlockSpec((TN, 1), lambda i: (i, 0)),
        pl.BlockSpec(packed["w_ih0"].shape, lambda i: (0, 0)),     # resident
    ]
    if L > 1:                               # skip dummy w_ihr DMA when L == 1
        args.append(packed["w_ihr"])
        in_specs.append(pl.BlockSpec(packed["w_ihr"].shape,
                                     lambda i: (0, 0, 0)))
    args += [packed["w_hh"], packed["b_i"], packed["b_hn"],
             packed["gamma"], packed["beta"]]
    in_specs += [
        pl.BlockSpec(packed["w_hh"].shape, lambda i: (0, 0, 0)),
        pl.BlockSpec(packed["b_i"].shape, lambda i: (0, 0, 0)),
        pl.BlockSpec(packed["b_hn"].shape, lambda i: (0, 0, 0)),
        pl.BlockSpec(packed["gamma"].shape, lambda i: (0, 0)),
        pl.BlockSpec(packed["beta"].shape, lambda i: (0, 0)),
    ]

    out, h_out = pl.pallas_call(
        kernel,
        grid=(Np // TN,),
        out_shape=(
            jax.ShapeDtypeStruct((Np, Hp), jnp.float32),
            jax.ShapeDtypeStruct((L, Np, Hp), jnp.float32),
        ),
        in_specs=in_specs,
        out_specs=(
            pl.BlockSpec((TN, Hp), lambda i: (i, 0)),
            pl.BlockSpec((L, TN, Hp), lambda i: (0, i, 0)),
        ),
        compiler_params=pltpu.CompilerParams(
            dimension_semantics=("parallel",),
            vmem_limit_bytes=_vmem_limit_bytes(packed, TN, D)),
    )(*args)

    if Np != N:
        out, h_out = out[:N], h_out[:, :N]
    return (out[:, :H] if Hp != H else out), h_out


def hidden_to_carry(hidden_state, packed):
    """(N, L, H) module layout -> lane-dense carry (L, N, Hp). Boundary only."""
    H, Hp = packed["hidden_dim"], packed["padded_dim"]
    carry = jnp.transpose(hidden_state, (1, 0, 2))
    return jnp.pad(carry, ((0, 0), (0, 0), (0, Hp - H))) if Hp != H else carry


def carry_to_hidden(carry, packed):
    """(L, N, Hp) carry -> (N, L, H) module layout. Boundary only."""
    return jnp.transpose(carry[:, :, :packed["hidden_dim"]], (1, 0, 2))


def rnn_layer_forward(inputs, hidden_state, masks, packed, batch_tile=None):
    """Module-interface adapter (hidden_state in (N, L, H), as in RNNLayer).
    TODO(synk): in a T>1 rollout keep the carry in (L, N, Hp) via rnn_step so
    this transpose/pad (an HBM round trip of the carry) is not paid per step.
    """
    carry = hidden_to_carry(hidden_state, packed)
    out, carry = rnn_step(inputs, carry, masks, packed, batch_tile)
    return out, carry_to_hidden(carry, packed)


# --------------------------------------------------------------------------
# Parameter construction: PyTorch-layout raw params + lane-dense bf16 packing
# --------------------------------------------------------------------------
def _orthogonal(key, shape):
    rows, cols = shape
    a = jax.random.normal(key, (max(rows, cols), min(rows, cols)), jnp.float32)
    q, r = jnp.linalg.qr(a)
    q = q * jnp.sign(jnp.diagonal(r))
    if rows < cols:
        q = q.T
    return q[:rows, :cols].astype(jnp.float32)


def make_raw_params(key, input_dim, hidden_dim, num_layers):
    """PyTorch nn.GRU layout: w_ih[l] (3H, D_in), w_hh[l] (3H, H), zero biases."""
    keys = jax.random.split(key, 2 * num_layers)
    w_ih = [_orthogonal(keys[l],
                        (3 * hidden_dim, input_dim if l == 0 else hidden_dim))
            for l in range(num_layers)]
    w_hh = [_orthogonal(keys[num_layers + l], (3 * hidden_dim, hidden_dim))
            for l in range(num_layers)]
    b_ih = [jnp.zeros((3 * hidden_dim,), jnp.float32) for _ in range(num_layers)]
    b_hh = [jnp.zeros((3 * hidden_dim,), jnp.float32) for _ in range(num_layers)]
    gamma = jnp.ones((hidden_dim,), jnp.float32)
    beta = jnp.zeros((hidden_dim,), jnp.float32)
    return dict(num_layers=num_layers, hidden_dim=hidden_dim,
                input_dim=input_dim, w_ih=w_ih, w_hh=w_hh,
                b_ih=b_ih, b_hh=b_hh, gamma=gamma, beta=beta)


def pack_params(raw, lane=128):
    """One-time host-side packing: transpose weights to (K, 3*Hp) and cast to
    bfloat16, zero-pad each gate block to Hp lanes, pad contraction rows to Hp,
    fold r/z biases.  Zero pads keep the LayerNorm 'pad lanes are zero'
    invariant; biases/gamma/beta stay f32."""
    L, H = raw["num_layers"], raw["hidden_dim"]
    Hp = ((H + lane - 1) // lane) * lane

    def pack_w(w):                      # (3H, K) -> (K, 3Hp) bf16, lane-dense
        w_t = w.T
        wp = jnp.concatenate(
            [jnp.pad(w_t[:, g * H:(g + 1) * H], ((0, 0), (0, Hp - H)))
             for g in range(3)], axis=1)
        return wp.astype(jnp.bfloat16)

    def pad_k(wp):                      # zero contraction rows H..Hp
        return jnp.pad(wp, ((0, Hp - H), (0, 0)))

    w_ih0 = pack_w(raw["w_ih"][0])                               # (D, 3Hp)
    w_ihr = (jnp.stack([pad_k(pack_w(raw["w_ih"][l])) for l in range(1, L)])
             if L > 1 else None)                                 # (L-1, Hp, 3Hp)
    w_hh = jnp.stack([pad_k(pack_w(raw["w_hh"][l])) for l in range(L)])

    def pad_gate_vec(b):                # (3H,) -> (3Hp,)
        return jnp.concatenate(
            [jnp.pad(b[g * H:(g + 1) * H], (0, Hp - H)) for g in range(3)])

    zeros_h = jnp.zeros((H,), jnp.float32)
    b_i = jnp.stack([pad_gate_vec(
        raw["b_ih"][l]
        + jnp.concatenate([raw["b_hh"][l][:2 * H], zeros_h]))[None, :]
        for l in range(L)])                                      # (L, 1, 3Hp)
    b_hn = jnp.stack([jnp.pad(raw["b_hh"][l][2 * H:], (0, Hp - H))[None, :]
                      for l in range(L)])                        # (L, 1, Hp)

    gamma = jnp.pad(raw["gamma"], (0, Hp - H))[None, :]          # (1, Hp)
    beta = jnp.pad(raw["beta"], (0, Hp - H))[None, :]            # (1, Hp)
    return dict(num_layers=L, hidden_dim=H, padded_dim=Hp,
                w_ih0=w_ih0, w_ihr=w_ihr, w_hh=w_hh,
                b_i=b_i, b_hn=b_hn, gamma=gamma, beta=beta)


# --------------------------------------------------------------------------
# Pure-JAX reference (same math, raw PyTorch-layout params)
# --------------------------------------------------------------------------
def rnn_layer_ref(inputs, hidden_state, masks, raw, bf16_dots=False):
    """Reference. bf16_dots=True mirrors the kernel's bf16 MXU feed (f32 acc)."""
    L, H = raw["num_layers"], raw["hidden_dim"]

    def mm(a, w):                       # a (N,K) @ w(3H,K).T
        if bf16_dots:
            return jnp.dot(a.astype(jnp.bfloat16), w.astype(jnp.bfloat16).T,
                           preferred_element_type=jnp.float32)
        return a @ w.T

    x = inputs
    h0 = jnp.transpose(hidden_state, (1, 0, 2))
    h_new_all = []
    for l in range(L):
        h_prev = h0[l] * masks
        gi = mm(x, raw["w_ih"][l]) + raw["b_ih"][l]
        gh = mm(h_prev, raw["w_hh"][l]) + raw["b_hh"][l]
        i_r, i_z, i_n = gi[:, :H], gi[:, H:2 * H], gi[:, 2 * H:]
        h_r, h_z, h_n = gh[:, :H], gh[:, H:2 * H], gh[:, 2 * H:]
        r = jax.nn.sigmoid(i_r + h_r)
        z = jax.nn.sigmoid(i_z + h_z)
        n = jnp.tanh(i_n + r * h_n)
        h_new = (1.0 - z) * n + z * h_prev
        h_new_all.append(h_new)
        x = h_new
    mean = jnp.mean(x, -1, keepdims=True)
    var = jnp.mean((x - mean) ** 2, -1, keepdims=True)
    out = (x - mean) / jnp.sqrt(var + 1e-5) * raw["gamma"] + raw["beta"]
    return out, jnp.transpose(jnp.stack(h_new_all), (1, 0, 2))


if __name__ == "__main__":
    key = jax.random.PRNGKey(0)

    # ---- main check: L = 2 layers ----
    N, D, H, L = 8, 16, 32, 2   # num_agents, input_dim, rnn_hidden_dim, rnn_layers
    k_p, k_x, k_h, k_m = jax.random.split(key, 4)

    raw = make_raw_params(k_p, D, H, L)
    packed = pack_params(raw)
    inputs = jax.random.normal(k_x, (N, D), jnp.float32)
    hidden_state = jax.random.normal(k_h, (N, L, H), jnp.float32)
    masks = (jax.random.uniform(k_m, (N, 1)) > 0.3).astype(jnp.float32)

    out, h_out = jax.block_until_ready(
        rnn_layer_forward(inputs, hidden_state, masks, packed))
    assert out.shape == (N, H) and h_out.shape == (N, L, H)

    out_m, h_m = rnn_layer_ref(inputs, hidden_state, masks, raw, bf16_dots=True)
    out_f, h_f = rnn_layer_ref(inputs, hidden_state, masks, raw)
    assert jnp.allclose(out, out_m, atol=1e-2, rtol=1e-2)      # matched precision
    assert jnp.allclose(h_out, h_m, atol=1e-2, rtol=1e-2)
    assert jnp.allclose(out, out_f, atol=6e-2, rtol=6e-2)      # vs full-f32 math
    assert jnp.allclose(h_out, h_f, atol=6e-2, rtol=6e-2)

    # ---- L = 1 (no w_ihr tensor at all) ----
    raw1 = make_raw_params(k_p, D, H, 1)
    packed1 = pack_params(raw1)
    hidden1 = hidden_state[:, :1, :]
    out1, h_out1 = jax.block_until_ready(
        rnn_layer_forward(inputs, hidden1, masks, packed1))
    out1_m, h1_m = rnn_layer_ref(inputs, hidden1, masks, raw1, bf16_dots=True)
    assert jnp.allclose(out1, out1_m, atol=1e-2, rtol=1e-2)
    assert jnp.allclose(h_out1, h1_m, atol=1e-2, rtol=1e-2)

    # ---- multi-tile batch grid (N=24, TN=8 -> grid=(3,), "parallel") ----
    k_x2, k_h2, k_m2 = jax.random.split(jax.random.PRNGKey(1), 3)
    N2 = 24
    inputs2 = jax.random.normal(k_x2, (N2, D), jnp.float32)
    hidden2 = jax.random.normal(k_h2, (N2, L, H), jnp.float32)
    masks2 = (jax.random.uniform(k_m2, (N2, 1)) > 0.3).astype(jnp.float32)
    out2, h_out2 = jax.block_until_ready(
        rnn_layer_forward(inputs2, hidden2, masks2, packed, batch_tile=8))
    out2_m, h2_m = rnn_layer_ref(inputs2, hidden2, masks2, raw, bf16_dots=True)
    assert jnp.allclose(out2, out2_m, atol=1e-2, rtol=1e-2)
    assert jnp.allclose(h_out2, h2_m, atol=1e-2, rtol=1e-2)

    # ---- carry-resident 3-step rollout via rnn_step (no per-step layout ops) --
    carry = hidden_to_carry(hidden_state, packed)
    h_state_ref = hidden_state
    roll_key = jax.random.PRNGKey(2)
    for _ in range(3):
        k1, k2, roll_key = jax.random.split(roll_key, 3)
        x_t = jax.random.normal(k1, (N, D), jnp.float32)
        m_t = (jax.random.uniform(k2, (N, 1)) > 0.2).astype(jnp.float32)
        out_t, carry = rnn_step(x_t, carry, m_t, packed)
        out_r, h_state_ref = rnn_layer_ref(x_t, h_state_ref, m_t, raw,
                                           bf16_dots=True)
    out_t, carry = jax.block_until_ready((out_t, carry))
    assert jnp.allclose(out_t, out_r, atol=2e-2, rtol=2e-2)
    assert jnp.allclose(carry_to_hidden(carry, packed), h_state_ref,
                        atol=2e-2, rtol=2e-2)

    print("KERNEL_OK")
</pallas_src>

<mosaic_0001>
module attributes {stable_mosaic.version = 11 : i64} {
  func.func @_gru_ln_kernel(%arg0: i32, %arg1: memref<8x16xf32, #tpu.memory_space<vmem>>, %arg2: memref<2x8x128xf32, #tpu.memory_space<vmem>>, %arg3: memref<8x1xf32, #tpu.memory_space<vmem>>, %arg4: memref<16x384xbf16, #tpu.memory_space<vmem>>, %arg5: memref<1x128x384xbf16, #tpu.memory_space<vmem>>, %arg6: memref<2x128x384xbf16, #tpu.memory_space<vmem>>, %arg7: memref<2x1x384xf32, #tpu.memory_space<vmem>>, %arg8: memref<2x1x128xf32, #tpu.memory_space<vmem>>, %arg9: memref<1x128xf32, #tpu.memory_space<vmem>>, %arg10: memref<1x128xf32, #tpu.memory_space<vmem>>, %arg11: memref<8x128xf32, #tpu.memory_space<vmem>>, %arg12: memref<2x8x128xf32, #tpu.memory_space<vmem>>) attributes {dimension_semantics = [#tpu.dimension_semantics<parallel>], iteration_bounds = array<i64: 1>, scalar_prefetch = 0 : i64, scratch_operands = 0 : i64, tpu.core_type = #tpu.core_type<tc>, window_params = [{transform_indices = @transform_0, window_bounds = array<i64: 8, 16>}, {transform_indices = @transform_1, window_bounds = array<i64: 2, 8, 128>}, {transform_indices = @transform_2, window_bounds = array<i64: 8, 1>}, {pipeline_mode = #tpu.pipeline_mode<synchronous>, transform_indices = @transform_3, window_bounds = array<i64: 16, 384>}, {pipeline_mode = #tpu.pipeline_mode<synchronous>, transform_indices = @transform_4, window_bounds = array<i64: 1, 128, 384>}, {pipeline_mode = #tpu.pipeline_mode<synchronous>, transform_indices = @transform_5, window_bounds = array<i64: 2, 128, 384>}, {pipeline_mode = #tpu.pipeline_mode<synchronous>, transform_indices = @transform_6, window_bounds = array<i64: 2, 1, 384>}, {pipeline_mode = #tpu.pipeline_mode<synchronous>, transform_indices = @transform_7, window_bounds = array<i64: 2, 1, 128>}, {pipeline_mode = #tpu.pipeline_mode<synchronous>, transform_indices = @transform_8, window_bounds = array<i64: 1, 128>}, {pipeline_mode = #tpu.pipeline_mode<synchronous>, transform_indices = @transform_9, window_bounds = array<i64: 1, 128>}, {transform_indices = @transform_10, window_bounds = array<i64: 8, 128>}, {transform_indices = @transform_11, window_bounds = array<i64: 2, 8, 128>}]} {
    %c0 = arith.constant 0 : index
    %c0_0 = arith.constant 0 : index
    %0 = vector.load %arg3[%c0, %c0_0] : memref<8x1xf32, #tpu.memory_space<vmem>>, vector<8x1xf32>
    %c0_1 = arith.constant 0 : index
    %c0_2 = arith.constant 0 : index
    %1 = vector.load %arg1[%c0_1, %c0_2] : memref<8x16xf32, #tpu.memory_space<vmem>>, vector<8x16xf32>
    %c0_3 = arith.constant 0 : index
    %c0_4 = arith.constant 0 : index
    %c0_5 = arith.constant 0 : index
    %2 = vector.load %arg2[%c0_3, %c0_4, %c0_5] : memref<2x8x128xf32, #tpu.memory_space<vmem>>, vector<1x8x128xf32>
    %3 = vector.shape_cast %2 : vector<1x8x128xf32> to vector<8x128xf32>
    %4 = vector.broadcast %0 : vector<8x1xf32> to vector<8x128xf32>
    %5 = arith.mulf %3, %4 : vector<8x128xf32>
    %c0_6 = arith.constant 0 : index
    %c0_7 = arith.constant 0 : index
    %6 = vector.load %arg4[%c0_6, %c0_7] : memref<16x384xbf16, #tpu.memory_space<vmem>>, vector<16x384xbf16>
    %7 = arith.truncf %1 : vector<8x16xf32> to vector<8x16xbf16>
    %cst = arith.constant dense<0.000000e+00> : vector<8x384xf32>
    %8 = tpu.matmul %7, %6, %cst {dimension_numbers = #tpu.dot_dimension_numbers<[1], [0], [0], [1], [0, 0, 1, 1], [], []>} : vector<8x16xbf16>, vector<16x384xbf16>, vector<8x384xf32> -> vector<8x384xf32>
    %c0_8 = arith.constant 0 : index
    %c0_9 = arith.constant 0 : index
    %c0_10 = arith.constant 0 : index
    %9 = vector.load %arg7[%c0_8, %c0_9, %c0_10] : memref<2x1x384xf32, #tpu.memory_space<vmem>>, vector<1x1x384xf32>
    %10 = vector.shape_cast %9 : vector<1x1x384xf32> to vector<1x384xf32>
    %11 = vector.broadcast %10 : vector<1x384xf32> to vector<8x384xf32>
    %12 = arith.addf %8, %11 : vector<8x384xf32>
    %13 = arith.truncf %5 : vector<8x128xf32> to vector<8x128xbf16>
    %c0_11 = arith.constant 0 : index
    %c0_12 = arith.constant 0 : index
    %c0_13 = arith.constant 0 : index
    %14 = vector.load %arg6[%c0_11, %c0_12, %c0_13] : memref<2x128x384xbf16, #tpu.memory_space<vmem>>, vector<1x128x384xbf16>
    %15 = vector.shape_cast %14 : vector<1x128x384xbf16> to vector<128x384xbf16>
    %cst_14 = arith.constant dense<0.000000e+00> : vector<8x384xf32>
    %16 = tpu.matmul %13, %15, %cst_14 {dimension_numbers = #tpu.dot_dimension_numbers<[1], [0], [0], [1], [0, 0, 1, 1], [], []>} : vector<8x128xbf16>, vector<128x384xbf16>, vector<8x384xf32> -> vector<8x384xf32>
    %17 = vector.extract_strided_slice %12 {offsets = [0, 0], sizes = [8, 128], strides = [1, 1]} : vector<8x384xf32> to vector<8x128xf32>
    %18 = vector.extract_strided_slice %16 {offsets = [0, 0], sizes = [8, 128], strides = [1, 1]} : vector<8x384xf32> to vector<8x128xf32>
    %19 = arith.addf %17, %18 : vector<8x128xf32>
    %20 = arith.negf %19 : vector<8x128xf32>
    %21 = math.exp %20 : vector<8x128xf32>
    %cst_15 = arith.constant 1.000000e+00 : f32
    %22 = vector.broadcast %cst_15 : f32 to vector<8x128xf32>
    %23 = arith.addf %22, %21 : vector<8x128xf32>
    %24 = arith.divf %22, %23 : vector<8x128xf32>
    %25 = vector.extract_strided_slice %12 {offsets = [0, 128], sizes = [8, 128], strides = [1, 1]} : vector<8x384xf32> to vector<8x128xf32>
    %26 = vector.extract_strided_slice %16 {offsets = [0, 128], sizes = [8, 128], strides = [1, 1]} : vector<8x384xf32> to vector<8x128xf32>
    %27 = arith.addf %25, %26 : vector<8x128xf32>
    %28 = arith.negf %27 : vector<8x128xf32>
    %29 = math.exp %28 : vector<8x128xf32>
    %cst_16 = arith.constant 1.000000e+00 : f32
    %30 = vector.broadcast %cst_16 : f32 to vector<8x128xf32>
    %31 = arith.addf %30, %29 : vector<8x128xf32>
    %32 = arith.divf %30, %31 : vector<8x128xf32>
    %33 = vector.extract_strided_slice %12 {offsets = [0, 256], sizes = [8, 128], strides = [1, 1]} : vector<8x384xf32> to vector<8x128xf32>
    %34 = vector.extract_strided_slice %16 {offsets = [0, 256], sizes = [8, 128], strides = [1, 1]} : vector<8x384xf32> to vector<8x128xf32>
    %c0_17 = arith.constant 0 : index
    %c0_18 = arith.constant 0 : index
    %c0_19 = arith.constant 0 : index
    %35 = vector.load %arg8[%c0_17, %c0_18, %c0_19] : memref<2x1x128xf32, #tpu.memory_space<vmem>>, vector<1x1x128xf32>
    %36 = vector.shape_cast %35 : vector<1x1x128xf32> to vector<1x128xf32>
    %37 = vector.broadcast %36 : vector<1x128xf32> to vector<8x128xf32>
    %38 = arith.addf %34, %37 : vector<8x128xf32>
    %39 = arith.mulf %24, %38 : vector<8x128xf32>
    %40 = arith.addf %33, %39 : vector<8x128xf32>
    %41 = math.tanh %40 : vector<8x128xf32>
    %42 = arith.subf %5, %41 : vector<8x128xf32>
    %43 = arith.mulf %32, %42 : vector<8x128xf32>
    %44 = arith.addf %41, %43 : vector<8x128xf32>
    %c0_20 = arith.constant 0 : index
    %c0_21 = arith.constant 0 : index
    %c0_22 = arith.constant 0 : index
    %45 = vector.load %arg12[%c0_20, %c0_21, %c0_22] : memref<2x8x128xf32, #tpu.memory_space<vmem>>, vector<1x8x128xf32>
    %46 = vector.shape_cast %45 : vector<1x8x128xf32> to vector<8x128xf32>
    %47 = vector.shape_cast %44 : vector<8x128xf32> to vector<1x8x128xf32>
    tpu.vector_store %arg12[%c0_20, %c0_21, %c0_22], %47 {strides = array<i32>} : memref<2x8x128xf32, #tpu.memory_space<vmem>>, vector<1x8x128xf32>,
    %c1 = arith.constant 1 : index
    %c0_23 = arith.constant 0 : index
    %c0_24 = arith.constant 0 : index
    %48 = vector.load %arg2[%c1, %c0_23, %c0_24] : memref<2x8x128xf32, #tpu.memory_space<vmem>>, vector<1x8x128xf32>
    %49 = vector.shape_cast %48 : vector<1x8x128xf32> to vector<8x128xf32>
    %50 = vector.broadcast %0 : vector<8x1xf32> to vector<8x128xf32>
    %51 = arith.mulf %49, %50 : vector<8x128xf32>
    %c0_25 = arith.constant 0 : index
    %c0_26 = arith.constant 0 : index
    %c0_27 = arith.constant 0 : index
    %52 = vector.load %arg5[%c0_25, %c0_26, %c0_27] : memref<1x128x384xbf16, #tpu.memory_space<vmem>>, vector<1x128x384xbf16>
    %53 = vector.shape_cast %52 : vector<1x128x384xbf16> to vector<128x384xbf16>
    %54 = arith.truncf %44 : vector<8x128xf32> to vector<8x128xbf16>
    %cst_28 = arith.constant dense<0.000000e+00> : vector<8x384xf32>
    %55 = tpu.matmul %54, %53, %cst_28 {dimension_numbers = #tpu.dot_dimension_numbers<[1], [0], [0], [1], [0, 0, 1, 1], [], []>} : vector<8x128xbf16>, vector<128x384xbf16>, vector<8x384xf32> -> vector<8x384xf32>
    %c1_29 = arith.constant 1 : index
    %c0_30 = arith.constant 0 : index
    %c0_31 = arith.constant 0 : index
    %56 = vector.load %arg7[%c1_29, %c0_30, %c0_31] : memref<2x1x384xf32, #tpu.memory_space<vmem>>, vector<1x1x384xf32>
    %57 = vector.shape_cast %56 : vector<1x1x384xf32> to vector<1x384xf32>
    %58 = vector.broadcast %57 : vector<1x384xf32> to vector<8x384xf32>
    %59 = arith.addf %55, %58 : vector<8x384xf32>
    %60 = arith.truncf %51 : vector<8x128xf32> to vector<8x128xbf16>
    %c1_32 = arith.constant 1 : index
    %c0_33 = arith.constant 0 : index
    %c0_34 = arith.constant 0 : index
    %61 = vector.load %arg6[%c1_32, %c0_33, %c0_34] : memref<2x128x384xbf16, #tpu.memory_space<vmem>>, vector<1x128x384xbf16>
    %62 = vector.shape_cast %61 : vector<1x128x384xbf16> to vector<128x384xbf16>
    %cst_35 = arith.constant dense<0.000000e+00> : vector<8x384xf32>
    %63 = tpu.matmul %60, %62, %cst_35 {dimension_numbers = #tpu.dot_dimension_numbers<[1], [0], [0], [1], [0, 0, 1, 1], [], []>} : vector<8x128xbf16>, vector<128x384xbf16>, vector<8x384xf32> -> vector<8x384xf32>
    %64 = vector.extract_strided_slice %59 {offsets = [0, 0], sizes = [8, 128], strides = [1, 1]} : vector<8x384xf32> to vector<8x128xf32>
    %65 = vector.extract_strided_slice %63 {offsets = [0, 0], sizes = [8, 128], strides = [1, 1]} : vector<8x384xf32> to vector<8x128xf32>
    %66 = arith.addf %64, %65 : vector<8x128xf32>
    %67 = arith.negf %66 : vector<8x128xf32>
    %68 = math.exp %67 : vector<8x128xf32>
    %cst_36 = arith.constant 1.000000e+00 : f32
    %69 = vector.broadcast %cst_36 : f32 to vector<8x128xf32>
    %70 = arith.addf %69, %68 : vector<8x128xf32>
    %71 = arith.divf %69, %70 : vector<8x128xf32>
    %72 = vector.extract_strided_slice %59 {offsets = [0, 128], sizes = [8, 128], strides = [1, 1]} : vector<8x384xf32> to vector<8x128xf32>
    %73 = vector.extract_strided_slice %63 {offsets = [0, 128], sizes = [8, 128], strides = [1, 1]} : vector<8x384xf32> to vector<8x128xf32>
    %74 = arith.addf %72, %73 : vector<8x128xf32>
    %75 = arith.negf %74 : vector<8x128xf32>
    %76 = math.exp %75 : vector<8x128xf32>
    %cst_37 = arith.constant 1.000000e+00 : f32
    %77 = vector.broadcast %cst_37 : f32 to vector<8x128xf32>
    %78 = arith.addf %77, %76 : vector<8x128xf32>
    %79 = arith.divf %77, %78 : vector<8x128xf32>
    %80 = vector.extract_strided_slice %59 {offsets = [0, 256], sizes = [8, 128], strides = [1, 1]} : vector<8x384xf32> to vector<8x128xf32>
    %81 = vector.extract_strided_slice %63 {offsets = [0, 256], sizes = [8, 128], strides = [1, 1]} : vector<8x384xf32> to vector<8x128xf32>
    %c1_38 = arith.constant 1 : index
    %c0_39 = arith.constant 0 : index
    %c0_40 = arith.constant 0 : index
    %82 = vector.load %arg8[%c1_38, %c0_39, %c0_40] : memref<2x1x128xf32, #tpu.memory_space<vmem>>, vector<1x1x128xf32>
    %83 = vector.shape_cast %82 : vector<1x1x128xf32> to vector<1x128xf32>
    %84 = vector.broadcast %83 : vector<1x128xf32> to vector<8x128xf32>
    %85 = arith.addf %81, %84 : vector<8x128xf32>
    %86 = arith.mulf %71, %85 : vector<8x128xf32>
    %87 = arith.addf %80, %86 : vector<8x128xf32>
    %88 = math.tanh %87 : vector<8x128xf32>
    %89 = arith.subf %51, %88 : vector<8x128xf32>
    %90 = arith.mulf %79, %89 : vector<8x128xf32>
    %91 = arith.addf %88, %90 : vector<8x128xf32>
    %c1_41 = arith.constant 1 : index
    %c0_42 = arith.constant 0 : index
    %c0_43 = arith.constant 0 : index
    %92 = vector.load %arg12[%c1_41, %c0_42, %c0_43] : memref<2x8x128xf32, #tpu.memory_space<vmem>>, vector<1x8x128xf32>
    %93 = vector.shape_cast %92 : vector<1x8x128xf32> to vector<8x128xf32>
    %94 = vector.shape_cast %91 : vector<8x128xf32> to vector<1x8x128xf32>
    tpu.vector_store %arg12[%c1_41, %c0_42, %c0_43], %94 {strides = array<i32>} : memref<2x8x128xf32, #tpu.memory_space<vmem>>, vector<1x8x128xf32>,
    %cst_44 = arith.constant dense<0.000000e+00> : vector<8xf32>
    %95 = vector.multi_reduction <add>, %91, %cst_44 [1] : vector<8x128xf32> to vector<8xf32>
    %96 = vector.shape_cast %95 : vector<8xf32> to vector<8x1xf32>
    %97 = arith.mulf %91, %91 : vector<8x128xf32>
    %cst_45 = arith.constant dense<0.000000e+00> : vector<8xf32>
    %98 = vector.multi_reduction <add>, %97, %cst_45 [1] : vector<8x128xf32> to vector<8xf32>
    %99 = vector.shape_cast %98 : vector<8xf32> to vector<8x1xf32>
    %cst_46 = arith.constant 3.125000e-02 : f32
    %100 = vector.broadcast %cst_46 : f32 to vector<8x1xf32>
    %101 = arith.mulf %96, %100 : vector<8x1xf32>
    %cst_47 = arith.constant 3.125000e-02 : f32
    %102 = vector.broadcast %cst_47 : f32 to vector<8x1xf32>
    %103 = arith.mulf %99, %102 : vector<8x1xf32>
    %104 = arith.mulf %101, %101 : vector<8x1xf32>
    %105 = arith.subf %103, %104 : vector<8x1xf32>
    %106 = vector.broadcast %101 : vector<8x1xf32> to vector<8x128xf32>
    %107 = arith.subf %91, %106 : vector<8x128xf32>
    %cst_48 = arith.constant 9.99999974E-6 : f32
    %108 = vector.broadcast %cst_48 : f32 to vector<8x1xf32>
    %109 = arith.addf %105, %108 : vector<8x1xf32>
    %110 = math.rsqrt %109 : vector<8x1xf32>
    %111 = vector.broadcast %110 : vector<8x1xf32> to vector<8x128xf32>
    %112 = arith.mulf %107, %111 : vector<8x128xf32>
    %c0_49 = arith.constant 0 : index
    %c0_50 = arith.constant 0 : index
    %113 = vector.load %arg9[%c0_49, %c0_50] : memref<1x128xf32, #tpu.memory_space<vmem>>, vector<1x128xf32>
    %114 = vector.broadcast %113 : vector<1x128xf32> to vector<8x128xf32>
    %115 = arith.mulf %112, %114 : vector<8x128xf32>
    %c0_51 = arith.constant 0 : index
    %c0_52 = arith.constant 0 : index
    %116 = vector.load %arg10[%c0_51, %c0_52] : memref<1x128xf32, #tpu.memory_space<vmem>>, vector<1x128xf32>
    %117 = vector.broadcast %116 : vector<1x128xf32> to vector<8x128xf32>
    %118 = arith.addf %115, %117 : vector<8x128xf32>
    %c0_53 = arith.constant 0 : index
    %c0_54 = arith.constant 0 : index
    %119 = vector.load %arg11[%c0_53, %c0_54] : memref<8x128xf32, #tpu.memory_space<vmem>>, vector<8x128xf32>
    tpu.vector_store %arg11[%c0_53, %c0_54], %118 {strides = array<i32>} : memref<8x128xf32, #tpu.memory_space<vmem>>, vector<8x128xf32>,
    return
  }
  func.func @transform_0(%arg0: i32) -> (i32, i32) {
    %c0_i32 = arith.constant 0 : i32
    %c0_i32_0 = arith.constant 0 : i32
    return %arg0, %c0_i32 : i32, i32
  }
  func.func @transform_1(%arg0: i32) -> (i32, i32, i32) {
    %c0_i32 = arith.constant 0 : i32
    %c0_i32_0 = arith.constant 0 : i32
    %c0_i32_1 = arith.constant 0 : i32
    return %c0_i32, %arg0, %c0_i32_0 : i32, i32, i32
  }
  func.func @transform_2(%arg0: i32) -> (i32, i32) {
    %c0_i32 = arith.constant 0 : i32
    %c0_i32_0 = arith.constant 0 : i32
    return %arg0, %c0_i32 : i32, i32
  }
  func.func @transform_3(%arg0: i32) -> (i32, i32) {
    %c0_i32 = arith.constant 0 : i32
    %c0_i32_0 = arith.constant 0 : i32
    %c0_i32_1 = arith.constant 0 : i32
    return %c0_i32, %c0_i32_0 : i32, i32
  }
  func.func @transform_4(%arg0: i32) -> (i32, i32, i32) {
    %c0_i32 = arith.constant 0 : i32
    %c0_i32_0 = arith.constant 0 : i32
    %c0_i32_1 = arith.constant 0 : i32
    %c0_i32_2 = arith.constant 0 : i32
    return %c0_i32, %c0_i32_0, %c0_i32_1 : i32, i32, i32
  }
  func.func @transform_5(%arg0: i32) -> (i32, i32, i32) {
    %c0_i32 = arith.constant 0 : i32
    %c0_i32_0 = arith.constant 0 : i32
    %c0_i32_1 = arith.constant 0 : i32
    %c0_i32_2 = arith.constant 0 : i32
    return %c0_i32, %c0_i32_0, %c0_i32_1 : i32, i32, i32
  }
  func.func @transform_6(%arg0: i32) -> (i32, i32, i32) {
    %c0_i32 = arith.constant 0 : i32
    %c0_i32_0 = arith.constant 0 : i32
    %c0_i32_1 = arith.constant 0 : i32
    %c0_i32_2 = arith.constant 0 : i32
    return %c0_i32, %c0_i32_0, %c0_i32_1 : i32, i32, i32
  }
  func.func @transform_7(%arg0: i32) -> (i32, i32, i32) {
    %c0_i32 = arith.constant 0 : i32
    %c0_i32_0 = arith.constant 0 : i32
    %c0_i32_1 = arith.constant 0 : i32
    %c0_i32_2 = arith.constant 0 : i32
    return %c0_i32, %c0_i32_0, %c0_i32_1 : i32, i32, i32
  }
  func.func @transform_8(%arg0: i32) -> (i32, i32) {
    %c0_i32 = arith.constant 0 : i32
    %c0_i32_0 = arith.constant 0 : i32
    %c0_i32_1 = arith.constant 0 : i32
    return %c0_i32, %c0_i32_0 : i32, i32
  }
  func.func @transform_9(%arg0: i32) -> (i32, i32) {
    %c0_i32 = arith.constant 0 : i32
    %c0_i32_0 = arith.constant 0 : i32
    %c0_i32_1 = arith.constant 0 : i32
    return %c0_i32, %c0_i32_0 : i32, i32
  }
  func.func @transform_10(%arg0: i32) -> (i32, i32) {
    %c0_i32 = arith.constant 0 : i32
    %c0_i32_0 = arith.constant 0 : i32
    return %arg0, %c0_i32 : i32, i32
  }
  func.func @transform_11(%arg0: i32) -> (i32, i32, i32) {
    %c0_i32 = arith.constant 0 : i32
    %c0_i32_0 = arith.constant 0 : i32
    %c0_i32_1 = arith.constant 0 : i32
    return %c0_i32, %arg0, %c0_i32_0 : i32, i32, i32
  }
}

</mosaic_0001>

<llo_original>
// kernel: tpu_custom_call.1
$region0: #{tpu_custom_call.1}
  #allocation0 [shape = 'u32[]', space=smem, size = 0x4, offset = 0x4, fixed_abs, tag = 'smem constant byte address 0x4 - core index']
  #allocation1 [shape = 'u32[144,128]{1,0:T(1,128)}', space=vmem, size = 0x12000, scoped, tag = 'internal scratch']
  %s0 = inlined_call_operand.vmem [shape: f32[8,16], index: 0, kind: input, shape index: {}]
  %s1 = inlined_call_operand.hbm [shape: f32[2,8,128], index: 1, kind: input, shape index: {}]
  %s2 = inlined_call_operand.vmem [shape: f32[8,1], index: 2, kind: input, shape index: {}]
  %s3 = inlined_call_operand.hbm [shape: bf16[16,384], index: 3, kind: input, shape index: {}]
  %s4 = inlined_call_operand.hbm [shape: bf16[1,128,384], index: 4, kind: input, shape index: {}]
  %s5 = inlined_call_operand.hbm [shape: bf16[2,128,384], index: 5, kind: input, shape index: {}]
  %s6 = inlined_call_operand.vmem [shape: f32[2,1,384], index: 6, kind: input, shape index: {}]
  %s7 = inlined_call_operand.vmem [shape: f32[2,1,128], index: 7, kind: input, shape index: {}]
  %s8 = inlined_call_operand.vmem [shape: f32[1,128], index: 8, kind: input, shape index: {}]
  %s9 = inlined_call_operand.vmem [shape: f32[1,128], index: 9, kind: input, shape index: {}]
  %s10 = inlined_call_operand.hbm [shape: f32[8,128], index: 10, kind: output, shape index: {0}]
  %s11 = inlined_call_operand.hbm [shape: f32[2,8,128], index: 11, kind: output, shape index: {1}]
  %12 = xla_tuple %s10, %s11
  %s13 = sld [smem:[#allocation0]]
  $region74: #{tpu_custom_call.1} parent=0
    _
  %s15 = ssub.s32 1, %s13
  %s16 = scalar_select 0, %s15, %s13
  $region1: #{tpu_custom_call.1} parent=0
    #allocation2 [shape = 'u8[8192]{0}', space=vmem, size = 0x2000, scoped, tag = 'input window, operand 1, single buffered']
    #allocation3 [shape = 's32[1]{0}', space=sflag, size = 0x4, scoped, tag = 'scoped memory for tpu_custom_call.1']
    #allocation4 [shape = 's32[1]{0}', space=sflag, size = 0x4, scoped, tag = 'scoped memory for tpu_custom_call.1']
    #allocation5 [shape = 'u8[12288]{0}', space=vmem, size = 0x3000, scoped, tag = 'input window, operand 3, single buffered']
    #allocation6 [shape = 's32[1]{0}', space=sflag, size = 0x4, scoped, tag = 'scoped memory for tpu_custom_call.1']
    #allocation7 [shape = 'u8[98304]{0}', space=vmem, size = 0x18000, scoped, tag = 'input window, operand 4, single buffered']
    #allocation8 [shape = 'u8[196608]{0}', space=vmem, size = 0x30000, scoped, tag = 'input window, operand 5, single buffered']
    #allocation9 [shape = 's32[1]{0}', space=sflag, size = 0x4, scoped, tag = 'scoped memory for tpu_custom_call.1']
    #allocation10 [shape = 'u8[4096]{0}', space=vmem, size = 0x1000, scoped, tag = 'output window, operand 0, single buffered']
    #allocation11 [shape = 'u8[8192]{0}', space=vmem, size = 0x2000, scoped, tag = 'output window, operand 1, single buffered']
    #allocation12 [shape = 's32[1]{0}', space=sflag, size = 0x4, scoped, tag = 'scoped memory for tpu_custom_call.1']
    %17 = vsyncpa [#allocation3], 0
    %18 = vsyncpa [#allocation6], 0
    %19 = vsyncpa [#allocation9], 0
    %20 = vsyncpa [#allocation4], 0
    %21 = vsyncpa [#allocation12], 0
    // Predicated region
    $region2: #{tpu_custom_call.1} parent=1 // pred_check
      _
    $region3: #{tpu_custom_call.1} parent=1 // pred_check_branch
      %23 = sbr.rel (0) target = $region5
    $region4: #{tpu_custom_call.1} parent=1 // pred_region
      _
    $region5: #{tpu_custom_call.1} parent=1 // pred_fallthru
      _
    // Predicated region
    $region6: #{tpu_custom_call.1} parent=1 // pred_check
      _
    $region7: #{tpu_custom_call.1} parent=1 // pred_check_branch
      %25 = sbr.rel (0) target = $region9
    $region8: #{tpu_custom_call.1} parent=1 // pred_region
      %s27 = ssub.s32 256, 256
      %28 = vsyncadd [#allocation3], %s27
      %s29 = sshll.u32 [#allocation2], 4
      %s30 = int_to_ptr.vmem [resolvable:$true] %s29
      %35 = dma.hbm_to_vmem [thread:$0]  %s1, 256, %s30, [#allocation3], 128, 128, 8
    $region9: #{tpu_custom_call.1} parent=1 // pred_fallthru
      _
    // Predicated region
    $region10: #{tpu_custom_call.1} parent=1 // pred_check
      _
    $region11: #{tpu_custom_call.1} parent=1 // pred_check_branch
      %37 = sbr.rel (0) target = $region13
    $region12: #{tpu_custom_call.1} parent=1 // pred_region
      _
    $region13: #{tpu_custom_call.1} parent=1 // pred_fallthru
      _
    // Predicated region
    $region14: #{tpu_custom_call.1} parent=1 // pred_check
      _
    $region15: #{tpu_custom_call.1} parent=1 // pred_check_branch
      %39 = sbr.rel (0) target = $region17
    $region16: #{tpu_custom_call.1} parent=1 // pred_region
      %s41 = ssub.s32 384, 384
      %42 = vsyncadd [#allocation6], %s41
      %s43 = sshll.u32 [#allocation5], 4
      %s44 = int_to_ptr.vmem [resolvable:$true] %s43
      %49 = dma.hbm_to_vmem [thread:$0]  %s3, 384, %s44, [#allocation6], 192, 192, 12
    $region17: #{tpu_custom_call.1} parent=1 // pred_fallthru
      _
    // Predicated region
    $region18: #{tpu_custom_call.1} parent=1 // pred_check
      _
    $region19: #{tpu_custom_call.1} parent=1 // pred_check_branch
      %51 = sbr.rel (0) target = $region21
    $region20: #{tpu_custom_call.1} parent=1 // pred_region
      %s53 = ssub.s32 3072, 3072
      %54 = vsyncadd [#allocation6], %s53
      %s55 = sshll.u32 [#allocation7], 4
      %s56 = int_to_ptr.vmem [resolvable:$true] %s55
      %61 = dma.hbm_to_vmem [thread:$0]  %s4, 3072, %s56, [#allocation6], 192, 192, 12
    $region21: #{tpu_custom_call.1} parent=1 // pred_fallthru
      _
    // Predicated region
    $region22: #{tpu_custom_call.1} parent=1 // pred_check
      _
    $region23: #{tpu_custom_call.1} parent=1 // pred_check_branch
      %63 = sbr.rel (0) target = $region25
    $region24: #{tpu_custom_call.1} parent=1 // pred_region
      %s65 = ssub.s32 6144, 6144
      %66 = vsyncadd [#allocation9], %s65
      %s67 = sshll.u32 [#allocation8], 4
      %s68 = int_to_ptr.vmem [resolvable:$true] %s67
      %73 = dma.hbm_to_vmem [thread:$0]  %s5, 6144, %s68, [#allocation9], 192, 192, 12
    $region25: #{tpu_custom_call.1} parent=1 // pred_fallthru
      _
    // Predicated region
    $region26: #{tpu_custom_call.1} parent=1 // pred_check
      _
    $region27: #{tpu_custom_call.1} parent=1 // pred_check_branch
      %75 = sbr.rel (0) target = $region29
    $region28: #{tpu_custom_call.1} parent=1 // pred_region
      _
    $region29: #{tpu_custom_call.1} parent=1 // pred_fallthru
      _
    // Predicated region
    $region30: #{tpu_custom_call.1} parent=1 // pred_check
      _
    $region31: #{tpu_custom_call.1} parent=1 // pred_check_branch
      %77 = sbr.rel (0) target = $region33
    $region32: #{tpu_custom_call.1} parent=1 // pred_region
      _
    $region33: #{tpu_custom_call.1} parent=1 // pred_fallthru
      _
    // Predicated region
    $region34: #{tpu_custom_call.1} parent=1 // pred_check
      _
    $region35: #{tpu_custom_call.1} parent=1 // pred_check_branch
      %79 = sbr.rel (0) target = $region37
    $region36: #{tpu_custom_call.1} parent=1 // pred_region
      _
    $region37: #{tpu_custom_call.1} parent=1 // pred_fallthru
      _
    // Predicated region
    $region38: #{tpu_custom_call.1} parent=1 // pred_check
      _
    $region39: #{tpu_custom_call.1} parent=1 // pred_check_branch
      %81 = sbr.rel (0) target = $region41
    $region40: #{tpu_custom_call.1} parent=1 // pred_region
      _
    $region41: #{tpu_custom_call.1} parent=1 // pred_fallthru
      _
    // Predicated region
    $region42: #{tpu_custom_call.1} parent=1 // pred_check
      _
    $region43: #{tpu_custom_call.1} parent=1 // pred_check_branch
      %83 = sbr.rel (0) target = $region45
    $region44: #{tpu_custom_call.1} parent=1 // pred_region
      %84 = dma.done [#allocation3], 256
    $region45: #{tpu_custom_call.1} parent=1 // pred_fallthru
      _
    // Predicated region
    $region46: #{tpu_custom_call.1} parent=1 // pred_check
      _
    $region47: #{tpu_custom_call.1} parent=1 // pred_check_branch
      %86 = sbr.rel (0) target = $region49
    $region48: #{tpu_custom_call.1} parent=1 // pred_region
      %87 = dma.done [#allocation6], 384
    $region49: #{tpu_custom_call.1} parent=1 // pred_fallthru
      _
    // Predicated region
    $region50: #{tpu_custom_call.1} parent=1 // pred_check
      _
    $region51: #{tpu_custom_call.1} parent=1 // pred_check_branch
      %89 = sbr.rel (0) target = $region53
    $region52: #{tpu_custom_call.1} parent=1 // pred_region
      %90 = dma.done [#allocation6], 3072
    $region53: #{tpu_custom_call.1} parent=1 // pred_fallthru
      _
    // Predicated region
    $region54: #{tpu_custom_call.1} parent=1 // pred_check
      _
    $region55: #{tpu_custom_call.1} parent=1 // pred_check_branch
      %92 = sbr.rel (0) target = $region57
    $region56: #{tpu_custom_call.1} parent=1 // pred_region
      %93 = dma.done [#allocation9], 6144
    $region57: #{tpu_custom_call.1} parent=1 // pred_fallthru
      _
    %v95 = vld [vmem:[%s2] sm:$0xff]
    %v96 = vld [vmem:[%s0] sm:$0xff]
    %v97 = vld [vmem:[#allocation2] sm:$0xff]
    %99 = vset.pattern.permute.xlu0 0
    %100 = vperm.xlu0 %99, %v95
    %v101 = vpop.permute.xlu0 %100
    %v103 = vmul.f32 %v97, %v101
    %v104 = vld [vmem:[#allocation5] sm:$0xff]
    %v105 = vld [vmem:[#allocation5 + $0x8] sm:$0xf]
    %v106 = vld [vmem:[#allocation5 + $0xc] sm:$0xff]
    %v107 = vld [vmem:[#allocation5 + $0x14] sm:$0xf]
    %v108 = vpack.c.bf16 %v96, %v96
    %v109 = vld [vmem:[%s6] sm:$0x7]
    %v111 = vlaneseq
    %v112 = vshrl.u32 %v111, 7
    %v113 = vsub.s32 0, %v112
    %v114 = vrot.slane %v109, %v113
    %v115 = vlaneseq
    %v116 = vshrl.u32 %v115, 7
    %v117 = vsub.s32 1, %v116
    %v118 = vrot.slane %v109, %v117
    %v119 = vlaneseq
    %v120 = vshrl.u32 %v119, 7
    %v121 = vsub.s32 2, %v120
    %v122 = vrot.slane %v109, %v121
    %v130 = vunpack.c.l.b16 %v104
    %v131 = vunpack.c.h.b16 %v104
    %v132 = vunpack.c.l.b16 %v105
    %v133 = vunpack.c.l.b16 %v106
    %v134 = vunpack.c.h.b16 %v106
    %v135 = vunpack.c.l.b16 %v107
    %v136 = vpack.c.b16 %v133, %v130
    %v137 = vpack.c.b16 %v134, %v131
    %v138 = vpack.c.b16 %v135, %v132
    %vm142 = vcmask 130048
    %v144 = vsel %vm142, %v108, 0
    %146 = vmatprep.subr.bf16.mxu0 %v137
    %147 = vmatpush1.bf16.msra.mxu0 %v136
    %148 = vmatprep.subr.bf16.mxu0 0
    %149 = vmatpush1.bf16.msra.mxu0 0
    %150 = vmatprep.subr.bf16.mxu0 0
    %151 = vmatpush1.bf16.msra.mxu0 0
    %152 = vmatprep.subr.bf16.mxu0 0
    %153 = vmatpush1.bf16.msra.mxu0 0
    %154 = vmatprep.subr.bf16.mxu0 0
    %155 = vmatpush1.bf16.msra.mxu0 0
    %156 = vmatprep.subr.bf16.mxu0 0
    %157 = vmatpush1.bf16.msra.mxu0 0
    %158 = vmatprep.subr.bf16.mxu0 0
    %159 = vmatpush1.bf16.msra.mxu0 0
    %160 = vmatprep.subr.bf16.mxu0 0
    %161 = vmatpush1.bf16.msra.mxu0 0
    %162 = vmatprep.subr.bf16.mxu0 0
    %163 = vmatpush1.bf16.msra.mxu0 0
    %164 = vmatprep.subr.bf16.mxu0 0
    %165 = vmatpush1.bf16.msra.mxu0 0
    %166 = vmatprep.subr.bf16.mxu0 0
    %167 = vmatpush1.bf16.msra.mxu0 0
    %168 = vmatprep.subr.bf16.mxu0 0
    %169 = vmatpush1.bf16.msra.mxu0 0
    %170 = vmatprep.subr.bf16.mxu0 0
    %171 = vmatpush1.bf16.msra.mxu0 0
    %172 = vmatprep.subr.bf16.mxu0 0
    %173 = vmatpush1.bf16.msra.mxu0 0
    %174 = vmatprep.subr.bf16.mxu0 0
    %175 = vmatpush1.bf16.msra.mxu0 0
    %176 = vmatprep.subr.bf16.mxu0 0
    %177 = vmatpush1.bf16.msra.mxu0 0
    %178 = vmatprep.mubr.bf16.mxu0 0
    %179 = vmatmul.mubr.bf16.gmra.mrb[0].mxu0 %v144
    %v180 = vpop.f32.mrb[0].mxu0
    %v181 = vadd.f32 %v114, %v180
    %v182 = vpop.f32.mrb[0].mxu0
    %v183 = vadd.f32 %v118, %v182
    %v184 = vpop.f32.mrb[0].mxu0
    %v185 = vpop.f32.mrb[0].mxu0
    %186 = vdwg.mxu0
    %187 = vmatprep.subr.bf16.mxu0 0
    %188 = vmatpush1.bf16.msra.mxu0 %v138
    %189 = vmatprep.subr.bf16.mxu0 0
    %190 = vmatpush1.bf16.msra.mxu0 0
    %191 = vmatprep.subr.bf16.mxu0 0
    %192 = vmatpush1.bf16.msra.mxu0 0
    %193 = vmatprep.subr.bf16.mxu0 0
    %194 = vmatpush1.bf16.msra.mxu0 0
    %195 = vmatprep.subr.bf16.mxu0 0
    %196 = vmatpush1.bf16.msra.mxu0 0
    %197 = vmatprep.subr.bf16.mxu0 0
    %198 = vmatpush1.bf16.msra.mxu0 0
    %199 = vmatprep.subr.bf16.mxu0 0
    %200 = vmatpush1.bf16.msra.mxu0 0
    %201 = vmatprep.subr.bf16.mxu0 0
    %202 = vmatpush1.bf16.msra.mxu0 0
    %203 = vmatprep.subr.bf16.mxu0 0
    %204 = vmatpush1.bf16.msra.mxu0 0
    %205 = vmatprep.subr.bf16.mxu0 0
    %206 = vmatpush1.bf16.msra.mxu0 0
    %207 = vmatprep.subr.bf16.mxu0 0
    %208 = vmatpush1.bf16.msra.mxu0 0
    %209 = vmatprep.subr.bf16.mxu0 0
    %210 = vmatpush1.bf16.msra.mxu0 0
    %211 = vmatprep.subr.bf16.mxu0 0
    %212 = vmatpush1.bf16.msra.mxu0 0
    %213 = vmatprep.subr.bf16.mxu0 0
    %214 = vmatpush1.bf16.msra.mxu0 0
    %215 = vmatprep.subr.bf16.mxu0 0
    %216 = vmatpush1.bf16.msra.mxu0 0
    %217 = vmatprep.subr.bf16.mxu0 0
    %218 = vmatpush1.bf16.msra.mxu0 0
    %219 = vmatprep.mubr.bf16.mxu0 0
    %220 = vmatmul.mubr.bf16.gmra.mrb[0].mxu0 %v144
    %v221 = vpop.f32.mrb[0].mxu0
    %v222 = vadd.f32 %v122, %v221
    %v223 = vpop.f32.mrb[0].mxu0
    %v224 = vpop.f32.mrb[0].mxu0
    %v225 = vpop.f32.mrb[0].mxu0
    %226 = vdwg.mxu0
    %v227 = vpack.c.bf16 %v103, %v103
    %v228 = vld [vmem:[#allocation8] sm:$0xff]
    %v229 = vld [vmem:[#allocation8 + $0x8] sm:$0xf]
    %v230 = vld [vmem:[#allocation8 + $0xc] sm:$0xff]
    %v231 = vld [vmem:[#allocation8 + $0x14] sm:$0xf]
    %v232 = vld [vmem:[#allocation8 + $0x18] sm:$0xff]
    %v233 = vld [vmem:[#allocation8 + $0x20] sm:$0xf]
    %v234 = vld [vmem:[#allocation8 + $0x24] sm:$0xff]
    %v235 = vld [vmem:[#allocation8 + $0x2c] sm:$0xf]
    %v236 = vld [vmem:[#allocation8 + $0x30] sm:$0xff]
    %v237 = vld [vmem:[#allocation8 + $0x38] sm:$0xf]
    %v238 = vld [vmem:[#allocation8 + $0x3c] sm:$0xff]
    %v239 = vld [vmem:[#allocation8 + $0x44] sm:$0xf]
    %v240 = vld [vmem:[#allocation8 + $0x48] sm:$0xff]
    %v241 = vld [vmem:[#allocation8 + $0x50] sm:$0xf]
    %v242 = vld [vmem:[#allocation8 + $0x54] sm:$0xff]
    %v243 = vld [vmem:[#allocation8 + $0x5c] sm:$0xf]
    %v244 = vld [vmem:[#allocation8 + $0x60] sm:$0xff]
    %v245 = vld [vmem:[#allocation8 + $0x68] sm:$0xf]
    %v246 = vld [vmem:[#allocation8 + $0x6c] sm:$0xff]
    %v247 = vld [vmem:[#allocation8 + $0x74] sm:$0xf]
    %v248 = vld [vmem:[#allocation8 + $0x78] sm:$0xff]
    %v249 = vld [vmem:[#allocation8 + $0x80] sm:$0xf]
    %v250 = vld [vmem:[#allocation8 + $0x84] sm:$0xff]
    %v251 = vld [vmem:[#allocation8 + $0x8c] sm:$0xf]
    %v252 = vld [vmem:[#allocation8 + $0x90] sm:$0xff]
    %v253 = vld [vmem:[#allocation8 + $0x98] sm:$0xf]
    %v254 = vld [vmem:[#allocation8 + $0x9c] sm:$0xff]
    %v255 = vld [vmem:[#allocation8 + $0xa4] sm:$0xf]
    %v256 = vld [vmem:[#allocation8 + $0xa8] sm:$0xff]
    %v257 = vld [vmem:[#allocation8 + $0xb0] sm:$0xf]
    %v258 = vld [vmem:[#allocation8 + $0xb4] sm:$0xff]
    %v259 = vld [vmem:[#allocation8 + $0xbc] sm:$0xf]
    %v292 = vunpack.c.l.b16 %v228
    %v293 = vunpack.c.h.b16 %v228
    %v294 = vunpack.c.l.b16 %v229
    %v295 = vunpack.c.l.b16 %v230
    %v296 = vunpack.c.h.b16 %v230
    %v297 = vunpack.c.l.b16 %v231
    %v298 = vunpack.c.l.b16 %v232
    %v299 = vunpack.c.h.b16 %v232
    %v300 = vunpack.c.l.b16 %v233
    %v301 = vunpack.c.l.b16 %v234
    %v302 = vunpack.c.h.b16 %v234
    %v303 = vunpack.c.l.b16 %v235
    %v304 = vunpack.c.l.b16 %v236
    %v305 = vunpack.c.h.b16 %v236
    %v306 = vunpack.c.l.b16 %v237
    %v307 = vunpack.c.l.b16 %v238
    %v308 = vunpack.c.h.b16 %v238
    %v309 = vunpack.c.l.b16 %v239
    %v310 = vunpack.c.l.b16 %v240
    %v311 = vunpack.c.h.b16 %v240
    %v312 = vunpack.c.l.b16 %v241
    %v313 = vunpack.c.l.b16 %v242
    %v314 = vunpack.c.h.b16 %v242
    %v315 = vunpack.c.l.b16 %v243
    %v316 = vunpack.c.l.b16 %v244
    %v317 = vunpack.c.h.b16 %v244
    %v318 = vunpack.c.l.b16 %v245
    %v319 = vunpack.c.l.b16 %v246
    %v320 = vunpack.c.h.b16 %v246
    %v321 = vunpack.c.l.b16 %v247
    %v322 = vunpack.c.l.b16 %v248
    %v323 = vunpack.c.h.b16 %v248
    %v324 = vunpack.c.l.b16 %v249
    %v325 = vunpack.c.l.b16 %v250
    %v326 = vunpack.c.h.b16 %v250
    %v327 = vunpack.c.l.b16 %v251
    %v328 = vunpack.c.l.b16 %v252
    %v329 = vunpack.c.h.b16 %v252
    %v330 = vunpack.c.l.b16 %v253
    %v331 = vunpack.c.l.b16 %v254
    %v332 = vunpack.c.h.b16 %v254
    %v333 = vunpack.c.l.b16 %v255
    %v334 = vunpack.c.l.b16 %v256
    %v335 = vunpack.c.h.b16 %v256
    %v336 = vunpack.c.l.b16 %v257
    %v337 = vunpack.c.l.b16 %v258
    %v338 = vunpack.c.h.b16 %v258
    %v339 = vunpack.c.l.b16 %v259
    %v340 = vpack.c.b16 %v295, %v292
    %v341 = vpack.c.b16 %v296, %v293
    %v342 = vpack.c.b16 %v297, %v294
    %v343 = vpack.c.b16 %v301, %v298
    %v344 = vpack.c.b16 %v302, %v299
    %v345 = vpack.c.b16 %v303, %v300
    %v346 = vpack.c.b16 %v307, %v304
    %v347 = vpack.c.b16 %v308, %v305
    %v348 = vpack.c.b16 %v309, %v306
    %v349 = vpack.c.b16 %v313, %v310
    %v350 = vpack.c.b16 %v314, %v311
    %v351 = vpack.c.b16 %v315, %v312
    %v352 = vpack.c.b16 %v319, %v316
    %v353 = vpack.c.b16 %v320, %v317
    %v354 = vpack.c.b16 %v321, %v318
    %v355 = vpack.c.b16 %v325, %v322
    %v356 = vpack.c.b16 %v326, %v323
    %v357 = vpack.c.b16 %v327, %v324
    %v358 = vpack.c.b16 %v331, %v328
    %v359 = vpack.c.b16 %v332, %v329
    %v360 = vpack.c.b16 %v333, %v330
    %v361 = vpack.c.b16 %v337, %v334
    %v362 = vpack.c.b16 %v338, %v335
    %v363 = vpack.c.b16 %v339, %v336
    %388 = vmatprep.subr.bf16.mxu0 %v341
    %389 = vmatpush1.bf16.msra.mxu0 %v340
    %390 = vmatprep.subr.bf16.mxu0 %v344
    %391 = vmatpush1.bf16.msra.mxu0 %v343
    %392 = vmatprep.subr.bf16.mxu0 %v347
    %393 = vmatpush1.bf16.msra.mxu0 %v346
    %394 = vmatprep.subr.bf16.mxu0 %v350
    %395 = vmatpush1.bf16.msra.mxu0 %v349
    %396 = vmatprep.subr.bf16.mxu0 %v353
    %397 = vmatpush1.bf16.msra.mxu0 %v352
    %398 = vmatprep.subr.bf16.mxu0 %v356
    %399 = vmatpush1.bf16.msra.mxu0 %v355
    %400 = vmatprep.subr.bf16.mxu0 %v359
    %401 = vmatpush1.bf16.msra.mxu0 %v358
    %402 = vmatprep.subr.bf16.mxu0 %v362
    %403 = vmatpush1.bf16.msra.mxu0 %v361
    %404 = vmatprep.subr.bf16.mxu0 0
    %405 = vmatpush1.bf16.msra.mxu0 0
    %406 = vmatprep.subr.bf16.mxu0 0
    %407 = vmatpush1.bf16.msra.mxu0 0
    %408 = vmatprep.subr.bf16.mxu0 0
    %409 = vmatpush1.bf16.msra.mxu0 0
    %410 = vmatprep.subr.bf16.mxu0 0
    %411 = vmatpush1.bf16.msra.mxu0 0
    %412 = vmatprep.subr.bf16.mxu0 0
    %413 = vmatpush1.bf16.msra.mxu0 0
    %414 = vmatprep.subr.bf16.mxu0 0
    %415 = vmatpush1.bf16.msra.mxu0 0
    %416 = vmatprep.subr.bf16.mxu0 0
    %417 = vmatpush1.bf16.msra.mxu0 0
    %418 = vmatprep.subr.bf16.mxu0 0
    %419 = vmatpush1.bf16.msra.mxu0 0
    %420 = vmatprep.mubr.bf16.mxu0 0
    %421 = vmatmul.mubr.bf16.gmra.mrb[0].mxu0 %v227
    %v422 = vpop.f32.mrb[0].mxu0
    %v423 = vadd.f32 0.0, %v422
    %v424 = vpop.f32.mrb[0].mxu0
    %v425 = vadd.f32 0.0, %v424
    %v426 = vpop.f32.mrb[0].mxu0
    %v427 = vpop.f32.mrb[0].mxu0
    %428 = vdwg.mxu0
    %429 = vmatprep.subr.bf16.mxu0 0
    %430 = vmatpush1.bf16.msra.mxu0 %v342
    %431 = vmatprep.subr.bf16.mxu0 0
    %432 = vmatpush1.bf16.msra.mxu0 %v345
    %433 = vmatprep.subr.bf16.mxu0 0
    %434 = vmatpush1.bf16.msra.mxu0 %v348
    %435 = vmatprep.subr.bf16.mxu0 0
    %436 = vmatpush1.bf16.msra.mxu0 %v351
    %437 = vmatprep.subr.bf16.mxu0 0
    %438 = vmatpush1.bf16.msra.mxu0 %v354
    %439 = vmatprep.subr.bf16.mxu0 0
    %440 = vmatpush1.bf16.msra.mxu0 %v357
    %441 = vmatprep.subr.bf16.mxu0 0
    %442 = vmatpush1.bf16.msra.mxu0 %v360
    %443 = vmatprep.subr.bf16.mxu0 0
    %444 = vmatpush1.bf16.msra.mxu0 %v363
    %445 = vmatprep.subr.bf16.mxu0 0
    %446 = vmatpush1.bf16.msra.mxu0 0
    %447 = vmatprep.subr.bf16.mxu0 0
    %448 = vmatpush1.bf16.msra.mxu0 0
    %449 = vmatprep.subr.bf16.mxu0 0
    %450 = vmatpush1.bf16.msra.mxu0 0
    %451 = vmatprep.subr.bf16.mxu0 0
    %452 = vmatpush1.bf16.msra.mxu0 0
    %453 = vmatprep.subr.bf16.mxu0 0
    %454 = vmatpush1.bf16.msra.mxu0 0
    %455 = vmatprep.subr.bf16.mxu0 0
    %456 = vmatpush1.bf16.msra.mxu0 0
    %457 = vmatprep.subr.bf16.mxu0 0
    %458 = vmatpush1.bf16.msra.mxu0 0
    %459 = vmatprep.subr.bf16.mxu0 0
    %460 = vmatpush1.bf16.msra.mxu0 0
    %461 = vmatprep.mubr.bf16.mxu0 0
    %462 = vmatmul.mubr.bf16.gmra.mrb[0].mxu0 %v227
    %v463 = vpop.f32.mrb[0].mxu0
    %v464 = vadd.f32 0.0, %v463
    %v465 = vpop.f32.mrb[0].mxu0
    %v466 = vpop.f32.mrb[0].mxu0
    %v467 = vpop.f32.mrb[0].mxu0
    %468 = vdwg.mxu0
    %v469 = vadd.f32 %v181, %v423
    %v470 = vxor.u32 %v469, 2147483648
    %v471 = vmul.f32 %v470, 1.442695
    %v472 = vpow.pop %v471
    %v473 = vadd.f32 %v472, 1.0
    %v474 = vrcp.pop %v473
    %v475 = vmul.f32 1.0, %v474
    %v476 = vadd.f32 %v183, %v425
    %v477 = vxor.u32 %v476, 2147483648
    %v478 = vmul.f32 %v477, 1.442695
    %v479 = vpow.pop %v478
    %v480 = vadd.f32 %v479, 1.0
    %v481 = vrcp.pop %v480
    %v482 = vmul.f32 1.0, %v481
    %v483 = vld [vmem:[%s7] sm:$0x1]
    %v485 = vlaneseq
    %v486 = vshrl.u32 %v485, 7
    %v487 = vsub.s32 0, %v486
    %v488 = vrot.slane %v483, %v487
    %v490 = vadd.f32 %v464, %v488
    %v491 = vmul.f32 %v475, %v490
    %v492 = vadd.f32 %v222, %v491
    %v493 = vtanh.pop %v492
    %v494 = vsub.f32 %v103, %v493
    %v495 = vmul.f32 %v482, %v494
    %v496 = vadd.f32 %v493, %v495
    %497 = vst [vmem:[#allocation11] sm:$0xff] %v496
    %s498 = scalar_lea.vmem [#allocation2], 8
    %v499 = vld [vmem:[%s498] sm:$0xff]
    %v500 = vmul.f32 %v499, %v101
    %v501 = vld [vmem:[#allocation7] sm:$0xff]
    %v502 = vld [vmem:[#allocation7 + $0x8] sm:$0xf]
    %v503 = vld [vmem:[#allocation7 + $0xc] sm:$0xff]
    %v504 = vld [vmem:[#allocation7 + $0x14] sm:$0xf]
    %v505 = vld [vmem:[#allocation7 + $0x18] sm:$0xff]
    %v506 = vld [vmem:[#allocation7 + $0x20] sm:$0xf]
    %v507 = vld [vmem:[#allocation7 + $0x24] sm:$0xff]
    %v508 = vld [vmem:[#allocation7 + $0x2c] sm:$0xf]
    %v509 = vld [vmem:[#allocation7 + $0x30] sm:$0xff]
    %v510 = vld [vmem:[#allocation7 + $0x38] sm:$0xf]
    %v511 = vld [vmem:[#allocation7 + $0x3c] sm:$0xff]
    %v512 = vld [vmem:[#allocation7 + $0x44] sm:$0xf]
    %v513 = vld [vmem:[#allocation7 + $0x48] sm:$0xff]
    %v514 = vld [vmem:[#allocation7 + $0x50] sm:$0xf]
    %v515 = vld [vmem:[#allocation7 + $0x54] sm:$0xff]
    %v516 = vld [vmem:[#allocation7 + $0x5c] sm:$0xf]
    %v517 = vld [vmem:[#allocation7 + $0x60] sm:$0xff]
    %v518 = vld [vmem:[#allocation7 + $0x68] sm:$0xf]
    %v519 = vld [vmem:[#allocation7 + $0x6c] sm:$0xff]
    %v520 = vld [vmem:[#allocation7 + $0x74] sm:$0xf]
    %v521 = vld [vmem:[#allocation7 + $0x78] sm:$0xff]
    %v522 = vld [vmem:[#allocation7 + $0x80] sm:$0xf]
    %v523 = vld [vmem:[#allocation7 + $0x84] sm:$0xff]
    %v524 = vld [vmem:[#allocation7 + $0x8c] sm:$0xf]
    %v525 = vld [vmem:[#allocation7 + $0x90] sm:$0xff]
    %v526 = vld [vmem:[#allocation7 + $0x98] sm:$0xf]
    %v527 = vld [vmem:[#allocation7 + $0x9c] sm:$0xff]
    %v528 = vld [vmem:[#allocation7 + $0xa4] sm:$0xf]
    %v529 = vld [vmem:[#allocation7 + $0xa8] sm:$0xff]
    %v530 = vld [vmem:[#allocation7 + $0xb0] sm:$0xf]
    %v531 = vld [vmem:[#allocation7 + $0xb4] sm:$0xff]
    %v532 = vld [vmem:[#allocation7 + $0xbc] sm:$0xf]
    %v533 = vpack.c.bf16 %v496, %v496
    %s534 = scalar_lea.vmem %s6, 3
    %v535 = vld [vmem:[%s534] sm:$0x7]
    %v537 = vlaneseq
    %v538 = vshrl.u32 %v537, 7
    %v539 = vsub.s32 0, %v538
    %v540 = vrot.slane %v535, %v539
    %v541 = vlaneseq
    %v542 = vshrl.u32 %v541, 7
    %v543 = vsub.s32 1, %v542
    %v544 = vrot.slane %v535, %v543
    %v545 = vlaneseq
    %v546 = vshrl.u32 %v545, 7
    %v547 = vsub.s32 2, %v546
    %v548 = vrot.slane %v535, %v547
    %v584 = vunpack.c.l.b16 %v501
    %v585 = vunpack.c.h.b16 %v501
    %v586 = vunpack.c.l.b16 %v502
    %v587 = vunpack.c.l.b16 %v503
    %v588 = vunpack.c.h.b16 %v503
    %v589 = vunpack.c.l.b16 %v504
    %v590 = vunpack.c.l.b16 %v505
    %v591 = vunpack.c.h.b16 %v505
    %v592 = vunpack.c.l.b16 %v506
    %v593 = vunpack.c.l.b16 %v507
    %v594 = vunpack.c.h.b16 %v507
    %v595 = vunpack.c.l.b16 %v508
    %v596 = vunpack.c.l.b16 %v509
    %v597 = vunpack.c.h.b16 %v509
    %v598 = vunpack.c.l.b16 %v510
    %v599 = vunpack.c.l.b16 %v511
    %v600 = vunpack.c.h.b16 %v511
    %v601 = vunpack.c.l.b16 %v512
    %v602 = vunpack.c.l.b16 %v513
    %v603 = vunpack.c.h.b16 %v513
    %v604 = vunpack.c.l.b16 %v514
    %v605 = vunpack.c.l.b16 %v515
    %v606 = vunpack.c.h.b16 %v515
    %v607 = vunpack.c.l.b16 %v516
    %v608 = vunpack.c.l.b16 %v517
    %v609 = vunpack.c.h.b16 %v517
    %v610 = vunpack.c.l.b16 %v518
    %v611 = vunpack.c.l.b16 %v519
    %v612 = vunpack.c.h.b16 %v519
    %v613 = vunpack.c.l.b16 %v520
    %v614 = vunpack.c.l.b16 %v521
    %v615 = vunpack.c.h.b16 %v521
    %v616 = vunpack.c.l.b16 %v522
    %v617 = vunpack.c.l.b16 %v523
    %v618 = vunpack.c.h.b16 %v523
    %v619 = vunpack.c.l.b16 %v524
    %v620 = vunpack.c.l.b16 %v525
    %v621 = vunpack.c.h.b16 %v525
    %v622 = vunpack.c.l.b16 %v526
    %v623 = vunpack.c.l.b16 %v527
    %v624 = vunpack.c.h.b16 %v527
    %v625 = vunpack.c.l.b16 %v528
    %v626 = vunpack.c.l.b16 %v529
    %v627 = vunpack.c.h.b16 %v529
    %v628 = vunpack.c.l.b16 %v530
    %v629 = vunpack.c.l.b16 %v531
    %v630 = vunpack.c.h.b16 %v531
    %v631 = vunpack.c.l.b16 %v532
    %v632 = vpack.c.b16 %v587, %v584
    %v633 = vpack.c.b16 %v588, %v585
    %v634 = vpack.c.b16 %v589, %v586
    %v635 = vpack.c.b16 %v593, %v590
    %v636 = vpack.c.b16 %v594, %v591
    %v637 = vpack.c.b16 %v595, %v592
    %v638 = vpack.c.b16 %v599, %v596
    %v639 = vpack.c.b16 %v600, %v597
    %v640 = vpack.c.b16 %v601, %v598
    %v641 = vpack.c.b16 %v605, %v602
    %v642 = vpack.c.b16 %v606, %v603
    %v643 = vpack.c.b16 %v607, %v604
    %v644 = vpack.c.b16 %v611, %v608
    %v645 = vpack.c.b16 %v612, %v609
    %v646 = vpack.c.b16 %v613, %v610
    %v647 = vpack.c.b16 %v617, %v614
    %v648 = vpack.c.b16 %v618, %v615
    %v649 = vpack.c.b16 %v619, %v616
    %v650 = vpack.c.b16 %v623, %v620
    %v651 = vpack.c.b16 %v624, %v621
    %v652 = vpack.c.b16 %v625, %v622
    %v653 = vpack.c.b16 %v629, %v626
    %v654 = vpack.c.b16 %v630, %v627
    %v655 = vpack.c.b16 %v631, %v628
    %680 = vmatprep.subr.bf16.mxu0 %v633
    %681 = vmatpush1.bf16.msra.mxu0 %v632
    %682 = vmatprep.subr.bf16.mxu0 %v636
    %683 = vmatpush1.bf16.msra.mxu0 %v635
    %684 = vmatprep.subr.bf16.mxu0 %v639
    %685 = vmatpush1.bf16.msra.mxu0 %v638
    %686 = vmatprep.subr.bf16.mxu0 %v642
    %687 = vmatpush1.bf16.msra.mxu0 %v641
    %688 = vmatprep.subr.bf16.mxu0 %v645
    %689 = vmatpush1.bf16.msra.mxu0 %v644
    %690 = vmatprep.subr.bf16.mxu0 %v648
    %691 = vmatpush1.bf16.msra.mxu0 %v647
    %692 = vmatprep.subr.bf16.mxu0 %v651
    %693 = vmatpush1.bf16.msra.mxu0 %v650
    %694 = vmatprep.subr.bf16.mxu0 %v654
    %695 = vmatpush1.bf16.msra.mxu0 %v653
    %696 = vmatprep.subr.bf16.mxu0 0
    %697 = vmatpush1.bf16.msra.mxu0 0
    %698 = vmatprep.subr.bf16.mxu0 0
    %699 = vmatpush1.bf16.msra.mxu0 0
    %700 = vmatprep.subr.bf16.mxu0 0
    %701 = vmatpush1.bf16.msra.mxu0 0
    %702 = vmatprep.subr.bf16.mxu0 0
    %703 = vmatpush1.bf16.msra.mxu0 0
    %704 = vmatprep.subr.bf16.mxu0 0
    %705 = vmatpush1.bf16.msra.mxu0 0
    %706 = vmatprep.subr.bf16.mxu0 0
    %707 = vmatpush1.bf16.msra.mxu0 0
    %708 = vmatprep.subr.bf16.mxu0 0
    %709 = vmatpush1.bf16.msra.mxu0 0
    %710 = vmatprep.subr.bf16.mxu0 0
    %711 = vmatpush1.bf16.msra.mxu0 0
    %712 = vmatprep.mubr.bf16.mxu0 0
    %713 = vmatmul.mubr.bf16.gmra.mrb[0].mxu0 %v533
    %v714 = vpop.f32.mrb[0].mxu0
    %v715 = vadd.f32 %v540, %v714
    %v716 = vpop.f32.mrb[0].mxu0
    %v717 = vadd.f32 %v544, %v716
    %v718 = vpop.f32.mrb[0].mxu0
    %v719 = vpop.f32.mrb[0].mxu0
    %720 = vdwg.mxu0
    %721 = vmatprep.subr.bf16.mxu0 0
    %722 = vmatpush1.bf16.msra.mxu0 %v634
    %723 = vmatprep.subr.bf16.mxu0 0
    %724 = vmatpush1.bf16.msra.mxu0 %v637
    %725 = vmatprep.subr.bf16.mxu0 0
    %726 = vmatpush1.bf16.msra.mxu0 %v640
    %727 = vmatprep.subr.bf16.mxu0 0
    %728 = vmatpush1.bf16.msra.mxu0 %v643
    %729 = vmatprep.subr.bf16.mxu0 0
    %730 = vmatpush1.bf16.msra.mxu0 %v646
    %731 = vmatprep.subr.bf16.mxu0 0
    %732 = vmatpush1.bf16.msra.mxu0 %v649
    %733 = vmatprep.subr.bf16.mxu0 0
    %734 = vmatpush1.bf16.msra.mxu0 %v652
    %735 = vmatprep.subr.bf16.mxu0 0
    %736 = vmatpush1.bf16.msra.mxu0 %v655
    %737 = vmatprep.subr.bf16.mxu0 0
    %738 = vmatpush1.bf16.msra.mxu0 0
    %739 = vmatprep.subr.bf16.mxu0 0
    %740 = vmatpush1.bf16.msra.mxu0 0
    %741 = vmatprep.subr.bf16.mxu0 0
    %742 = vmatpush1.bf16.msra.mxu0 0
    %743 = vmatprep.subr.bf16.mxu0 0
    %744 = vmatpush1.bf16.msra.mxu0 0
    %745 = vmatprep.subr.bf16.mxu0 0
    %746 = vmatpush1.bf16.msra.mxu0 0
    %747 = vmatprep.subr.bf16.mxu0 0
    %748 = vmatpush1.bf16.msra.mxu0 0
    %749 = vmatprep.subr.bf16.mxu0 0
    %750 = vmatpush1.bf16.msra.mxu0 0
    %751 = vmatprep.subr.bf16.mxu0 0
    %752 = vmatpush1.bf16.msra.mxu0 0
    %753 = vmatprep.mubr.bf16.mxu0 0
    %754 = vmatmul.mubr.bf16.gmra.mrb[0].mxu0 %v533
    %v755 = vpop.f32.mrb[0].mxu0
    %v756 = vadd.f32 %v548, %v755
    %v757 = vpop.f32.mrb[0].mxu0
    %v758 = vpop.f32.mrb[0].mxu0
    %v759 = vpop.f32.mrb[0].mxu0
    %760 = vdwg.mxu0
    %v761 = vpack.c.bf16 %v500, %v500
    %s762 = scalar_lea.vmem [#allocation8], 192
    %v763 = vld [vmem:[%s762] sm:$0xff]
    %v764 = vld [vmem:[%s762 + $0x8] sm:$0xf]
    %v765 = vld [vmem:[%s762 + $0xc] sm:$0xff]
    %v766 = vld [vmem:[%s762 + $0x14] sm:$0xf]
    %v767 = vld [vmem:[%s762 + $0x18] sm:$0xff]
    %v768 = vld [vmem:[%s762 + $0x20] sm:$0xf]
    %v769 = vld [vmem:[%s762 + $0x24] sm:$0xff]
    %v770 = vld [vmem:[%s762 + $0x2c] sm:$0xf]
    %v771 = vld [vmem:[%s762 + $0x30] sm:$0xff]
    %v772 = vld [vmem:[%s762 + $0x38] sm:$0xf]
    %v773 = vld [vmem:[%s762 + $0x3c] sm:$0xff]
    %v774 = vld [vmem:[%s762 + $0x44] sm:$0xf]
    %v775 = vld [vmem:[%s762 + $0x48] sm:$0xff]
    %v776 = vld [vmem:[%s762 + $0x50] sm:$0xf]
    %v777 = vld [vmem:[%s762 + $0x54] sm:$0xff]
    %v778 = vld [vmem:[%s762 + $0x5c] sm:$0xf]
    %v779 = vld [vmem:[%s762 + $0x60] sm:$0xff]
    %v780 = vld [vmem:[%s762 + $0x68] sm:$0xf]
    %v781 = vld [vmem:[%s762 + $0x6c] sm:$0xff]
    %v782 = vld [vmem:[%s762 + $0x74] sm:$0xf]
    %v783 = vld [vmem:[%s762 + $0x78] sm:$0xff]
    %v784 = vld [vmem:[%s762 + $0x80] sm:$0xf]
    %v785 = vld [vmem:[%s762 + $0x84] sm:$0xff]
    %v786 = vld [vmem:[%s762 + $0x8c] sm:$0xf]
    %v787 = vld [vmem:[%s762 + $0x90] sm:$0xff]
    %v788 = vld [vmem:[%s762 + $0x98] sm:$0xf]
    %v789 = vld [vmem:[%s762 + $0x9c] sm:$0xff]
    %v790 = vld [vmem:[%s762 + $0xa4] sm:$0xf]
    %v791 = vld [vmem:[%s762 + $0xa8] sm:$0xff]
    %v792 = vld [vmem:[%s762 + $0xb0] sm:$0xf]
    %v793 = vld [vmem:[%s762 + $0xb4] sm:$0xff]
    %v794 = vld [vmem:[%s762 + $0xbc] sm:$0xf]
    %v827 = vunpack.c.l.b16 %v763
    %v828 = vunpack.c.h.b16 %v763
    %v829 = vunpack.c.l.b16 %v764
    %v830 = vunpack.c.l.b16 %v765
    %v831 = vunpack.c.h.b16 %v765
    %v832 = vunpack.c.l.b16 %v766
    %v833 = vunpack.c.l.b16 %v767
    %v834 = vunpack.c.h.b16 %v767
    %v835 = vunpack.c.l.b16 %v768
    %v836 = vunpack.c.l.b16 %v769
    %v837 = vunpack.c.h.b16 %v769
    %v838 = vunpack.c.l.b16 %v770
    %v839 = vunpack.c.l.b16 %v771
    %v840 = vunpack.c.h.b16 %v771
    %v841 = vunpack.c.l.b16 %v772
    %v842 = vunpack.c.l.b16 %v773
    %v843 = vunpack.c.h.b16 %v773
    %v844 = vunpack.c.l.b16 %v774
    %v845 = vunpack.c.l.b16 %v775
    %v846 = vunpack.c.h.b16 %v775
    %v847 = vunpack.c.l.b16 %v776
    %v848 = vunpack.c.l.b16 %v777
    %v849 = vunpack.c.h.b16 %v777
    %v850 = vunpack.c.l.b16 %v778
    %v851 = vunpack.c.l.b16 %v779
    %v852 = vunpack.c.h.b16 %v779
    %v853 = vunpack.c.l.b16 %v780
    %v854 = vunpack.c.l.b16 %v781
    %v855 = vunpack.c.h.b16 %v781
    %v856 = vunpack.c.l.b16 %v782
    %v857 = vunpack.c.l.b16 %v783
    %v858 = vunpack.c.h.b16 %v783
    %v859 = vunpack.c.l.b16 %v784
    %v860 = vunpack.c.l.b16 %v785
    %v861 = vunpack.c.h.b16 %v785
    %v862 = vunpack.c.l.b16 %v786
    %v863 = vunpack.c.l.b16 %v787
    %v864 = vunpack.c.h.b16 %v787
    %v865 = vunpack.c.l.b16 %v788
    %v866 = vunpack.c.l.b16 %v789
    %v867 = vunpack.c.h.b16 %v789
    %v868 = vunpack.c.l.b16 %v790
    %v869 = vunpack.c.l.b16 %v791
    %v870 = vunpack.c.h.b16 %v791
    %v871 = vunpack.c.l.b16 %v792
    %v872 = vunpack.c.l.b16 %v793
    %v873 = vunpack.c.h.b16 %v793
    %v874 = vunpack.c.l.b16 %v794
    %v875 = vpack.c.b16 %v830, %v827
    %v876 = vpack.c.b16 %v831, %v828
    %v877 = vpack.c.b16 %v832, %v829
    %v878 = vpack.c.b16 %v836, %v833
    %v879 = vpack.c.b16 %v837, %v834
    %v880 = vpack.c.b16 %v838, %v835
    %v881 = vpack.c.b16 %v842, %v839
    %v882 = vpack.c.b16 %v843, %v840
    %v883 = vpack.c.b16 %v844, %v841
    %v884 = vpack.c.b16 %v848, %v845
    %v885 = vpack.c.b16 %v849, %v846
    %v886 = vpack.c.b16 %v850, %v847
    %v887 = vpack.c.b16 %v854, %v851
    %v888 = vpack.c.b16 %v855, %v852
    %v889 = vpack.c.b16 %v856, %v853
    %v890 = vpack.c.b16 %v860, %v857
    %v891 = vpack.c.b16 %v861, %v858
    %v892 = vpack.c.b16 %v862, %v859
    %v893 = vpack.c.b16 %v866, %v863
    %v894 = vpack.c.b16 %v867, %v864
    %v895 = vpack.c.b16 %v868, %v865
    %v896 = vpack.c.b16 %v872, %v869
    %v897 = vpack.c.b16 %v873, %v870
    %v898 = vpack.c.b16 %v874, %v871
    %923 = vmatprep.subr.bf16.mxu0 %v876
    %924 = vmatpush1.bf16.msra.mxu0 %v875
    %925 = vmatprep.subr.bf16.mxu0 %v879
    %926 = vmatpush1.bf16.msra.mxu0 %v878
    %927 = vmatprep.subr.bf16.mxu0 %v882
    %928 = vmatpush1.bf16.msra.mxu0 %v881
    %929 = vmatprep.subr.bf16.mxu0 %v885
    %930 = vmatpush1.bf16.msra.mxu0 %v884
    %931 = vmatprep.subr.bf16.mxu0 %v888
    %932 = vmatpush1.bf16.msra.mxu0 %v887
    %933 = vmatprep.subr.bf16.mxu0 %v891
    %934 = vmatpush1.bf16.msra.mxu0 %v890
    %935 = vmatprep.subr.bf16.mxu0 %v894
    %936 = vmatpush1.bf16.msra.mxu0 %v893
    %937 = vmatprep.subr.bf16.mxu0 %v897
    %938 = vmatpush1.bf16.msra.mxu0 %v896
    %939 = vmatprep.subr.bf16.mxu0 0
    %940 = vmatpush1.bf16.msra.mxu0 0
    %941 = vmatprep.subr.bf16.mxu0 0
    %942 = vmatpush1.bf16.msra.mxu0 0
    %943 = vmatprep.subr.bf16.mxu0 0
    %944 = vmatpush1.bf16.msra.mxu0 0
    %945 = vmatprep.subr.bf16.mxu0 0
    %946 = vmatpush1.bf16.msra.mxu0 0
    %947 = vmatprep.subr.bf16.mxu0 0
    %948 = vmatpush1.bf16.msra.mxu0 0
    %949 = vmatprep.subr.bf16.mxu0 0
    %950 = vmatpush1.bf16.msra.mxu0 0
    %951 = vmatprep.subr.bf16.mxu0 0
    %952 = vmatpush1.bf16.msra.mxu0 0
    %953 = vmatprep.subr.bf16.mxu0 0
    %954 = vmatpush1.bf16.msra.mxu0 0
    %955 = vmatprep.mubr.bf16.mxu0 0
    %956 = vmatmul.mubr.bf16.gmra.mrb[0].mxu0 %v761
    %v957 = vpop.f32.mrb[0].mxu0
    %v958 = vadd.f32 0.0, %v957
    %v959 = vpop.f32.mrb[0].mxu0
    %v960 = vadd.f32 0.0, %v959
    %v961 = vpop.f32.mrb[0].mxu0
    %v962 = vpop.f32.mrb[0].mxu0
    %963 = vdwg.mxu0
    %964 = vmatprep.subr.bf16.mxu0 0
    %965 = vmatpush1.bf16.msra.mxu0 %v877
    %966 = vmatprep.subr.bf16.mxu0 0
    %967 = vmatpush1.bf16.msra.mxu0 %v880
    %968 = vmatprep.subr.bf16.mxu0 0
    %969 = vmatpush1.bf16.msra.mxu0 %v883
    %970 = vmatprep.subr.bf16.mxu0 0
    %971 = vmatpush1.bf16.msra.mxu0 %v886
    %972 = vmatprep.subr.bf16.mxu0 0
    %973 = vmatpush1.bf16.msra.mxu0 %v889
    %974 = vmatprep.subr.bf16.mxu0 0
    %975 = vmatpush1.bf16.msra.mxu0 %v892
    %976 = vmatprep.subr.bf16.mxu0 0
    %977 = vmatpush1.bf16.msra.mxu0 %v895
    %978 = vmatprep.subr.bf16.mxu0 0
    %979 = vmatpush1.bf16.msra.mxu0 %v898
    %980 = vmatprep.subr.bf16.mxu0 0
    %981 = vmatpush1.bf16.msra.mxu0 0
    %982 = vmatprep.subr.bf16.mxu0 0
    %983 = vmatpush1.bf16.msra.mxu0 0
    %984 = vmatprep.subr.bf16.mxu0 0
    %985 = vmatpush1.bf16.msra.mxu0 0
    %986 = vmatprep.subr.bf16.mxu0 0
    %987 = vmatpush1.bf16.msra.mxu0 0
    %988 = vmatprep.subr.bf16.mxu0 0
    %989 = vmatpush1.bf16.msra.mxu0 0
    %990 = vmatprep.subr.bf16.mxu0 0
    %991 = vmatpush1.bf16.msra.mxu0 0
    %992 = vmatprep.subr.bf16.mxu0 0
    %993 = vmatpush1.bf16.msra.mxu0 0
    %994 = vmatprep.subr.bf16.mxu0 0
    %995 = vmatpush1.bf16.msra.mxu0 0
    %996 = vmatprep.mubr.bf16.mxu0 0
    %997 = vmatmul.mubr.bf16.gmra.mrb[0].mxu0 %v761
    %v998 = vpop.f32.mrb[0].mxu0
    %v999 = vadd.f32 0.0, %v998
    %v1000 = vpop.f32.mrb[0].mxu0
    %v1001 = vpop.f32.mrb[0].mxu0
    %v1002 = vpop.f32.mrb[0].mxu0
    %1003 = vdwg.mxu0
    %v1004 = vadd.f32 %v715, %v958
    %v1005 = vxor.u32 %v1004, 2147483648
    %v1006 = vmul.f32 %v1005, 1.442695
    %v1007 = vpow.pop %v1006
    %v1008 = vadd.f32 %v1007, 1.0
    %v1009 = vrcp.pop %v1008
    %v1010 = vmul.f32 1.0, %v1009
    %v1011 = vadd.f32 %v717, %v960
    %v1012 = vxor.u32 %v1011, 2147483648
    %v1013 = vmul.f32 %v1012, 1.442695
    %v1014 = vpow.pop %v1013
    %v1015 = vadd.f32 %v1014, 1.0
    %v1016 = vrcp.pop %v1015
    %v1017 = vmul.f32 1.0, %v1016
    %s1018 = scalar_lea.vmem %s7, 1
    %v1019 = vld [vmem:[%s1018] sm:$0x1]
    %v1021 = vlaneseq
    %v1022 = vshrl.u32 %v1021, 7
    %v1023 = vsub.s32 0, %v1022
    %v1024 = vrot.slane %v1019, %v1023
    %v1026 = vadd.f32 %v999, %v1024
    %v1027 = vmul.f32 %v1010, %v1026
    %v1028 = vadd.f32 %v756, %v1027
    %v1029 = vtanh.pop %v1028
    %v1030 = vsub.f32 %v500, %v1029
    %v1031 = vmul.f32 %v1017, %v1030
    %v1032 = vadd.f32 %v1029, %v1031
    %s1033 = scalar_lea.vmem [#allocation11], 8
    %1034 = vst [vmem:[%s1033] sm:$0xff] %v1032
    %1035 = vadd.xlane.f32.xlu0 %v1032
    %v1036 = vpop.xlane.xlu0 %1035
    %v1037 = vmul.f32 %v1032, %v1032
    %1038 = vadd.xlane.f32.xlu0 %v1037
    %v1039 = vpop.xlane.xlu0 %1038
    %v1040 = vmul.f32 %v1036, 0.03125
    %v1041 = vmul.f32 %v1039, 0.03125
    %v1042 = vmul.f32 %v1040, %v1040
    %v1043 = vsub.f32 %v1041, %v1042
    %v1044 = vsub.f32 %v1032, %v1040
    %v1045 = vadd.f32 %v1043, 1e-05
    %v1046 = vrsqrt.pop %v1045
    %v1047 = vmul.f32 %v1044, %v1046
    %v1048 = vld [vmem:[%s8] sm:$0x1]
    %v1050 = vlaneseq
    %v1051 = vshrl.u32 %v1050, 7
    %v1052 = vsub.s32 0, %v1051
    %v1053 = vrot.slane %v1048, %v1052
    %v1055 = vmul.f32 %v1047, %v1053
    %v1056 = vld [vmem:[%s9] sm:$0x1]
    %v1058 = vlaneseq
    %v1059 = vshrl.u32 %v1058, 7
    %v1060 = vsub.s32 0, %v1059
    %v1061 = vrot.slane %v1056, %v1060
    %v1063 = vadd.f32 %v1055, %v1061
    %1064 = vst [vmem:[#allocation10] sm:$0xff] %v1063
    // Predicated region
    $region58: #{tpu_custom_call.1} parent=1 // pred_check
      _
    $region59: #{tpu_custom_call.1} parent=1 // pred_check_branch
      %1066 = sbr.rel (0) target = $region61
    $region60: #{tpu_custom_call.1} parent=1 // pred_region
      %s1068 = ssub.s32 128, 128
      %1069 = vsyncadd [#allocation4], %s1068
      %s1071 = sshll.u32 [#allocation10], 4
      %s1072 = int_to_ptr.vmem [resolvable:$true] %s1071
      %1074 = dma.vmem_to_hbm [thread:$0]  %s1072, 128, %s10, [#allocation4]
    $region61: #{tpu_custom_call.1} parent=1 // pred_fallthru
      _
    // Predicated region
    $region62: #{tpu_custom_call.1} parent=1 // pred_check
      _
    $region63: #{tpu_custom_call.1} parent=1 // pred_check_branch
      %1076 = sbr.rel (0) target = $region65
    $region64: #{tpu_custom_call.1} parent=1 // pred_region
      %s1078 = ssub.s32 256, 256
      %1079 = vsyncadd [#allocation12], %s1078
      %s1080 = sshll.u32 [#allocation11], 4
      %s1081 = int_to_ptr.vmem [resolvable:$true] %s1080
      %1086 = dma.vmem_to_hbm [thread:$0]  %s1081, 256, %s11, [#allocation12], 128, 128, 8
    $region65: #{tpu_custom_call.1} parent=1 // pred_fallthru
      _
    // Predicated region
    $region66: #{tpu_custom_call.1} parent=1 // pred_check
      _
    $region67: #{tpu_custom_call.1} parent=1 // pred_check_branch
      %1088 = sbr.rel (0) target = $region69
    $region68: #{tpu_custom_call.1} parent=1 // pred_region
      %1089 = dma.done [#allocation4], 128
    $region69: #{tpu_custom_call.1} parent=1 // pred_fallthru
      _
    // Predicated region
    $region70: #{tpu_custom_call.1} parent=1 // pred_check
      _
    $region71: #{tpu_custom_call.1} parent=1 // pred_check_branch
      %1091 = sbr.rel (0) target = $region73
    $region72: #{tpu_custom_call.1} parent=1 // pred_region
      %1092 = dma.done [#allocation12], 256
    $region73: #{tpu_custom_call.1} parent=1 // pred_fallthru
      _
    %1093 = vsyncpa [#allocation3], 1
    %1094 = vsyncpa [#allocation6], 1
    %1095 = vsyncpa [#allocation9], 1
    %1096 = vsyncpa [#allocation4], 1
    %1097 = vsyncpa [#allocation12], 1

</llo_original>
